<compile_context>
chip_gen: v7x
topology: tpu7x:2x2x1
jax: 0.10.0
libtpu: 0.0.40
codegen_flags: <defaults>
</compile_context>

<pallas_src>
import functools
import numpy as np
import jax
import jax.numpy as jnp
from jax import lax
from jax.experimental import pallas as pl
from jax.experimental.pallas import tpu as pltpu

# ---------------- config (small synthetic shapes, consistent with the module) ----------------
B, S, DIM = 2, 8, 32          # batch, sequence, model dim
MLP_DIM = 64                  # FeedForward hidden dim
UNITS = 128                   # reservoir units (scaled down from 1000)
DEPTH = 2
LEAKY = 1.0
SPECTRAL_RADIUS = 0.9
INPUT_SCALING = 1.0
CYCLE_WEIGHT = 0.05
JUMP_WEIGHT = 0.5
JUMP_SIZE = 13                # scaled down from 137 to fit UNITS=128
CONNECTION_WEIGHT = 0.08
LN_EPS = 1e-5
INV_SQRT2 = 0.7071067811865476
_GELU_C = 0.7978845608028654  # sqrt(2/pi)


def _gelu_tanh(x):
    # tanh-form GELU: the transcendental goes to the EUP slot (free relative to VALU).
    return 0.5 * x * (1.0 + jnp.tanh(_GELU_C * (x + 0.044715 * x * x * x)))


# -------- fused kernel: DEPTH x [leaky-ESN reservoir -> Residual(PreNorm(FF))], summed/depth --------
def _fused_kernel(x_ref, w_in_ref, w_res_ref, w_out_ref, gamma_ref, beta_ref,
                  w1_ref, b1_ref, w2_ref, b2_ref, o_ref,
                  *, batch, seq, depth, units, leaky):
    # x_ref: (S*B, D) f32, rows ordered (t, b).  Matmul weights arrive as bf16 (pre-cast in
    # the wrapper); all weight refs carry a leading layer axis except w_in_ref, which is
    # layer-fused along its output (N) axis: (D, depth*U).
    x = x_ref[...]                                            # (S*B, D) f32, reused by every layer

    # fused input projection: all layers, all (t, b) tokens, ONE MXU call (M=S*B, N=depth*U)
    xproj_all = jnp.dot(x.astype(jnp.bfloat16), w_in_ref[...],
                        preferred_element_type=jnp.float32)   # (S*B, depth*U) f32

    acc = jnp.zeros_like(x)
    for layer in range(depth):                                # static, tiny -> unrolled
        # ---- ReservoirLayer (leaky ESN) with batch-folded (B, U) hidden state ----
        xproj = xproj_all[:, layer * units:(layer + 1) * units]   # lane-tile-aligned slice
        w_res = w_res_ref[layer]                              # (U, U) bf16, loop-invariant
        h = jnp.zeros((batch, units), jnp.float32)
        h_steps = []                                          # vreg-resident hidden states
        for t in range(seq):                                  # fully unrolled, static slices
            row = t * batch
            pre = xproj[row:row + batch, :] + jnp.dot(
                h.astype(jnp.bfloat16), w_res, preferred_element_type=jnp.float32)
            if leaky == 1.0:                                  # trace-time specialization
                h = jnp.tanh(pre)
            else:
                h = (1.0 - leaky) * h + leaky * jnp.tanh(pre)
            h_steps.append(h)
        hall = jnp.concatenate(h_steps, axis=0)               # (S*B, U), rows ordered (t, b)

        # linear readout over all timesteps in one MXU call (M = S*B)
        res = jnp.dot(hall.astype(jnp.bfloat16), w_out_ref[layer],
                      preferred_element_type=jnp.float32)     # (S*B, D) f32

        # ---- Residual(PreNorm(FeedForward)) ----
        mean = jnp.mean(res, axis=-1, keepdims=True)
        var = jnp.mean(jnp.square(res - mean), axis=-1, keepdims=True)
        xn = (res - mean) * lax.rsqrt(var + LN_EPS)
        xn = xn * gamma_ref[layer] + beta_ref[layer]
        hmid = jnp.dot(xn.astype(jnp.bfloat16), w1_ref[layer],
                       preferred_element_type=jnp.float32) + b1_ref[layer]
        hmid = _gelu_tanh(hmid)
        y = jnp.dot(hmid.astype(jnp.bfloat16), w2_ref[layer],
                    preferred_element_type=jnp.float32) + b2_ref[layer]

        acc = acc + y + res                                   # residual + running layer sum

    o_ref[...] = acc * (1.0 / depth)                          # single store at the end


# ---------------- wrapper ----------------
def reservoir_forward(x, params):
    b, s, d = x.shape
    depth, u, _ = params["w_res"].shape
    mlp = params["w1"].shape[-1]

    # (B,S,D) -> (S*B, D) with row = t*B + b so each unrolled time step touches a contiguous
    # (B, U) sublane block; transpose/reshape stay in the XLA wrapper (free).
    xsb = jnp.transpose(x, (1, 0, 2)).reshape(s * b, d)

    # layer-fused input-projection weights (D, depth*U); all matmul weights pre-cast to bf16.
    w_in_all = jnp.transpose(params["w_in"], (1, 0, 2)).reshape(d, depth * u).astype(jnp.bfloat16)
    w_res = params["w_res"].astype(jnp.bfloat16)
    w_out = params["w_out"].astype(jnp.bfloat16)
    w1 = params["w1"].astype(jnp.bfloat16)
    w2 = params["w2"].astype(jnp.bfloat16)

    kernel = functools.partial(_fused_kernel, batch=b, seq=s, depth=depth, units=u,
                               leaky=float(LEAKY))
    vmem = pl.BlockSpec(memory_space=pltpu.MemorySpace.VMEM)  # whole array, VMEM resident

    m = s * b
    flops = (2 * m * d * depth * u            # fused input projection
             + depth * s * 2 * b * u * u      # recurrence
             + depth * 2 * m * u * d          # readout
             + depth * 2 * m * d * mlp        # FF up
             + depth * 2 * m * mlp * d)       # FF down
    transcendentals = depth * (s * b * u + m * mlp)
    inputs = (xsb, w_in_all, w_res, w_out, params["gamma"], params["beta"],
              w1, params["b1"], w2, params["b2"])
    bytes_accessed = sum(a.size * a.dtype.itemsize for a in inputs) + m * d * 4

    out = pl.pallas_call(
        kernel,
        out_shape=jax.ShapeDtypeStruct((m, d), jnp.float32),
        in_specs=[vmem] * 10,
        out_specs=vmem,
        cost_estimate=pl.CostEstimate(flops=flops, transcendentals=transcendentals,
                                      bytes_accessed=bytes_accessed),
    )(*inputs)

    return jnp.transpose(out.reshape(s, b, d), (1, 0, 2))


# ---------------- pure-JAX f32 reference (exact erf GELU), for tolerance validation ----------------
def reservoir_reference(x, params):
    b, s, d = x.shape
    depth, u, _ = params["w_res"].shape
    total = jnp.zeros_like(x)
    for layer in range(depth):
        xproj = jnp.einsum("bsd,du->bsu", x, params["w_in"][layer])
        h = jnp.zeros((b, u), jnp.float32)
        hs = []
        for t in range(s):
            pre = xproj[:, t, :] + h @ params["w_res"][layer]
            h = (1.0 - LEAKY) * h + LEAKY * jnp.tanh(pre)
            hs.append(h)
        hall = jnp.stack(hs, axis=1)                           # (B, S, U)
        res = jnp.einsum("bsu,ud->bsd", hall, params["w_out"][layer])
        mean = res.mean(-1, keepdims=True)
        var = jnp.square(res - mean).mean(-1, keepdims=True)
        xn = (res - mean) * lax.rsqrt(var + LN_EPS)
        xn = xn * params["gamma"][layer] + params["beta"][layer]
        hmid = xn @ params["w1"][layer] + params["b1"][layer]
        hmid = 0.5 * hmid * (1.0 + jax.scipy.special.erf(hmid * INV_SQRT2))  # exact GELU
        y = hmid @ params["w2"][layer] + params["b2"][layer]
        total = total + (y + res)
    return total / depth


# ---------------- deterministic parameter init (stacked over layers) ----------------
def init_params(key):
    names = ("w_in", "w_res", "w_out", "gamma", "beta", "w1", "b1", "w2", "b2")
    per_layer = {k: [] for k in names}
    for layer in range(DEPTH):
        keys = jax.random.split(jax.random.fold_in(key, layer), 4)
        # reservoir input weights: random signs * connection_weight * input_scaling
        signs = jnp.where(jax.random.uniform(keys[0], (DIM, UNITS)) < 0.5, -1.0, 1.0)
        w_in = (signs * CONNECTION_WEIGHT * INPUT_SCALING).astype(jnp.float32)
        # cycle-reservoir-with-jumps recurrent matrix, rescaled to spectral radius
        w = np.zeros((UNITS, UNITS), np.float32)
        idx = np.arange(UNITS)
        w[idx, (idx + 1) % UNITS] = CYCLE_WEIGHT
        for i in range(0, UNITS - JUMP_SIZE + 1, JUMP_SIZE):
            j = (i + JUMP_SIZE) % UNITS
            w[i, j] += JUMP_WEIGHT
            w[j, i] += JUMP_WEIGHT
        rho = float(np.max(np.abs(np.linalg.eigvals(w))))
        w_res = jnp.asarray(w * (SPECTRAL_RADIUS / rho), dtype=jnp.float32)
        w_out = (jax.random.normal(keys[1], (UNITS, DIM)) / np.sqrt(UNITS)).astype(jnp.float32)
        # LayerNorm params (PyTorch default init: weight=1, bias=0)
        gamma = jnp.ones((1, DIM), jnp.float32)
        beta = jnp.zeros((1, DIM), jnp.float32)
        # FeedForward linears (uniform, like torch default fan-in init)
        lim1 = 1.0 / np.sqrt(DIM)
        w1 = jax.random.uniform(keys[2], (DIM, MLP_DIM), minval=-lim1, maxval=lim1).astype(jnp.float32)
        b1 = jax.random.uniform(jax.random.fold_in(keys[2], 1), (1, MLP_DIM),
                                minval=-lim1, maxval=lim1).astype(jnp.float32)
        lim2 = 1.0 / np.sqrt(MLP_DIM)
        w2 = jax.random.uniform(keys[3], (MLP_DIM, DIM), minval=-lim2, maxval=lim2).astype(jnp.float32)
        b2 = jax.random.uniform(jax.random.fold_in(keys[3], 1), (1, DIM),
                                minval=-lim2, maxval=lim2).astype(jnp.float32)
        vals = dict(w_in=w_in, w_res=w_res, w_out=w_out, gamma=gamma, beta=beta,
                    w1=w1, b1=b1, w2=w2, b2=b2)
        for k in names:
            per_layer[k].append(vals[k])
    return {k: jnp.stack(v, axis=0) for k, v in per_layer.items()}


if __name__ == "__main__":
    key = jax.random.PRNGKey(0)
    xkey, pkey = jax.random.split(key)
    x = jax.random.normal(xkey, (B, S, DIM), dtype=jnp.float32)
    params = init_params(pkey)

    fwd = jax.jit(reservoir_forward)
    out = jax.block_until_ready(fwd(x, params))
    assert out.shape == (B, S, DIM) and out.dtype == jnp.float32
    assert bool(jnp.all(jnp.isfinite(out)))

    # bf16-MXU / tanh-GELU kernel vs full-f32 exact-GELU reference (generous tolerance).
    ref = reservoir_reference(x, params)
    max_err = float(jnp.max(jnp.abs(out - ref)))
    assert max_err < 1e-1, f"max |kernel - f32 reference| = {max_err}"

    print("KERNEL_OK")
</pallas_src>

<mosaic_0001>
module attributes {stable_mosaic.version = 11 : i64} {
  func.func @_fused_kernel(%arg0: memref<16x32xf32, #tpu.memory_space<vmem>>, %arg1: memref<32x256xbf16, #tpu.memory_space<vmem>>, %arg2: memref<2x128x128xbf16, #tpu.memory_space<vmem>>, %arg3: memref<2x128x32xbf16, #tpu.memory_space<vmem>>, %arg4: memref<2x1x32xf32, #tpu.memory_space<vmem>>, %arg5: memref<2x1x32xf32, #tpu.memory_space<vmem>>, %arg6: memref<2x32x64xbf16, #tpu.memory_space<vmem>>, %arg7: memref<2x1x64xf32, #tpu.memory_space<vmem>>, %arg8: memref<2x64x32xbf16, #tpu.memory_space<vmem>>, %arg9: memref<2x1x32xf32, #tpu.memory_space<vmem>>, %arg10: memref<16x32xf32, #tpu.memory_space<vmem>>) attributes {dimension_semantics = [], scalar_prefetch = 0 : i64, scratch_operands = 0 : i64, tpu.core_type = #tpu.core_type<tc>} {
    %c0 = arith.constant 0 : index
    %c0_0 = arith.constant 0 : index
    %0 = vector.load %arg0[%c0, %c0_0] : memref<16x32xf32, #tpu.memory_space<vmem>>, vector<16x32xf32>
    %1 = arith.truncf %0 : vector<16x32xf32> to vector<16x32xbf16>
    %c0_1 = arith.constant 0 : index
    %c0_2 = arith.constant 0 : index
    %2 = vector.load %arg1[%c0_1, %c0_2] : memref<32x256xbf16, #tpu.memory_space<vmem>>, vector<32x256xbf16>
    %cst = arith.constant dense<0.000000e+00> : vector<16x256xf32>
    %3 = tpu.matmul %1, %2, %cst {dimension_numbers = #tpu.dot_dimension_numbers<[1], [0], [0], [1], [0, 0, 1, 1], [], []>} : vector<16x32xbf16>, vector<32x256xbf16>, vector<16x256xf32> -> vector<16x256xf32>
    %cst_3 = arith.constant 0.000000e+00 : f32
    %4 = vector.broadcast %cst_3 : f32 to vector<16x32xf32>
    %5 = vector.extract_strided_slice %3 {offsets = [0, 0], sizes = [16, 128], strides = [1, 1]} : vector<16x256xf32> to vector<16x128xf32>
    %c0_4 = arith.constant 0 : index
    %c0_5 = arith.constant 0 : index
    %c0_6 = arith.constant 0 : index
    %6 = vector.load %arg2[%c0_4, %c0_5, %c0_6] : memref<2x128x128xbf16, #tpu.memory_space<vmem>>, vector<1x128x128xbf16>
    %7 = vector.shape_cast %6 : vector<1x128x128xbf16> to vector<128x128xbf16>
    %cst_7 = arith.constant 0.000000e+00 : f32
    %8 = vector.broadcast %cst_7 : f32 to vector<2x128xf32>
    %9 = vector.extract_strided_slice %5 {offsets = [0, 0], sizes = [2, 128], strides = [1, 1]} : vector<16x128xf32> to vector<2x128xf32>
    %10 = arith.truncf %8 : vector<2x128xf32> to vector<2x128xbf16>
    %cst_8 = arith.constant dense<0.000000e+00> : vector<2x128xf32>
    %11 = tpu.matmul %10, %7, %cst_8 {dimension_numbers = #tpu.dot_dimension_numbers<[1], [0], [0], [1], [0, 0, 1, 1], [], []>} : vector<2x128xbf16>, vector<128x128xbf16>, vector<2x128xf32> -> vector<2x128xf32>
    %12 = arith.addf %9, %11 : vector<2x128xf32>
    %13 = math.tanh %12 : vector<2x128xf32>
    %14 = vector.extract_strided_slice %5 {offsets = [2, 0], sizes = [2, 128], strides = [1, 1]} : vector<16x128xf32> to vector<2x128xf32>
    %15 = arith.truncf %13 : vector<2x128xf32> to vector<2x128xbf16>
    %cst_9 = arith.constant dense<0.000000e+00> : vector<2x128xf32>
    %16 = tpu.matmul %15, %7, %cst_9 {dimension_numbers = #tpu.dot_dimension_numbers<[1], [0], [0], [1], [0, 0, 1, 1], [], []>} : vector<2x128xbf16>, vector<128x128xbf16>, vector<2x128xf32> -> vector<2x128xf32>
    %17 = arith.addf %14, %16 : vector<2x128xf32>
    %18 = math.tanh %17 : vector<2x128xf32>
    %19 = vector.extract_strided_slice %5 {offsets = [4, 0], sizes = [2, 128], strides = [1, 1]} : vector<16x128xf32> to vector<2x128xf32>
    %20 = arith.truncf %18 : vector<2x128xf32> to vector<2x128xbf16>
    %cst_10 = arith.constant dense<0.000000e+00> : vector<2x128xf32>
    %21 = tpu.matmul %20, %7, %cst_10 {dimension_numbers = #tpu.dot_dimension_numbers<[1], [0], [0], [1], [0, 0, 1, 1], [], []>} : vector<2x128xbf16>, vector<128x128xbf16>, vector<2x128xf32> -> vector<2x128xf32>
    %22 = arith.addf %19, %21 : vector<2x128xf32>
    %23 = math.tanh %22 : vector<2x128xf32>
    %24 = vector.extract_strided_slice %5 {offsets = [6, 0], sizes = [2, 128], strides = [1, 1]} : vector<16x128xf32> to vector<2x128xf32>
    %25 = arith.truncf %23 : vector<2x128xf32> to vector<2x128xbf16>
    %cst_11 = arith.constant dense<0.000000e+00> : vector<2x128xf32>
    %26 = tpu.matmul %25, %7, %cst_11 {dimension_numbers = #tpu.dot_dimension_numbers<[1], [0], [0], [1], [0, 0, 1, 1], [], []>} : vector<2x128xbf16>, vector<128x128xbf16>, vector<2x128xf32> -> vector<2x128xf32>
    %27 = arith.addf %24, %26 : vector<2x128xf32>
    %28 = math.tanh %27 : vector<2x128xf32>
    %29 = vector.extract_strided_slice %5 {offsets = [8, 0], sizes = [2, 128], strides = [1, 1]} : vector<16x128xf32> to vector<2x128xf32>
    %30 = arith.truncf %28 : vector<2x128xf32> to vector<2x128xbf16>
    %cst_12 = arith.constant dense<0.000000e+00> : vector<2x128xf32>
    %31 = tpu.matmul %30, %7, %cst_12 {dimension_numbers = #tpu.dot_dimension_numbers<[1], [0], [0], [1], [0, 0, 1, 1], [], []>} : vector<2x128xbf16>, vector<128x128xbf16>, vector<2x128xf32> -> vector<2x128xf32>
    %32 = arith.addf %29, %31 : vector<2x128xf32>
    %33 = math.tanh %32 : vector<2x128xf32>
    %34 = vector.extract_strided_slice %5 {offsets = [10, 0], sizes = [2, 128], strides = [1, 1]} : vector<16x128xf32> to vector<2x128xf32>
    %35 = arith.truncf %33 : vector<2x128xf32> to vector<2x128xbf16>
    %cst_13 = arith.constant dense<0.000000e+00> : vector<2x128xf32>
    %36 = tpu.matmul %35, %7, %cst_13 {dimension_numbers = #tpu.dot_dimension_numbers<[1], [0], [0], [1], [0, 0, 1, 1], [], []>} : vector<2x128xbf16>, vector<128x128xbf16>, vector<2x128xf32> -> vector<2x128xf32>
    %37 = arith.addf %34, %36 : vector<2x128xf32>
    %38 = math.tanh %37 : vector<2x128xf32>
    %39 = vector.extract_strided_slice %5 {offsets = [12, 0], sizes = [2, 128], strides = [1, 1]} : vector<16x128xf32> to vector<2x128xf32>
    %40 = arith.truncf %38 : vector<2x128xf32> to vector<2x128xbf16>
    %cst_14 = arith.constant dense<0.000000e+00> : vector<2x128xf32>
    %41 = tpu.matmul %40, %7, %cst_14 {dimension_numbers = #tpu.dot_dimension_numbers<[1], [0], [0], [1], [0, 0, 1, 1], [], []>} : vector<2x128xbf16>, vector<128x128xbf16>, vector<2x128xf32> -> vector<2x128xf32>
    %42 = arith.addf %39, %41 : vector<2x128xf32>
    %43 = math.tanh %42 : vector<2x128xf32>
    %44 = vector.extract_strided_slice %5 {offsets = [14, 0], sizes = [2, 128], strides = [1, 1]} : vector<16x128xf32> to vector<2x128xf32>
    %45 = arith.truncf %43 : vector<2x128xf32> to vector<2x128xbf16>
    %cst_15 = arith.constant dense<0.000000e+00> : vector<2x128xf32>
    %46 = tpu.matmul %45, %7, %cst_15 {dimension_numbers = #tpu.dot_dimension_numbers<[1], [0], [0], [1], [0, 0, 1, 1], [], []>} : vector<2x128xbf16>, vector<128x128xbf16>, vector<2x128xf32> -> vector<2x128xf32>
    %47 = arith.addf %44, %46 : vector<2x128xf32>
    %48 = math.tanh %47 : vector<2x128xf32>
    %49 = tpu.concatenate %13, %18, %23, %28, %33, %38, %43, %48 in 0 : vector<2x128xf32>, vector<2x128xf32>, vector<2x128xf32>, vector<2x128xf32>, vector<2x128xf32>, vector<2x128xf32>, vector<2x128xf32>, vector<2x128xf32> -> vector<16x128xf32>
    %50 = arith.truncf %49 : vector<16x128xf32> to vector<16x128xbf16>
    %c0_16 = arith.constant 0 : index
    %c0_17 = arith.constant 0 : index
    %c0_18 = arith.constant 0 : index
    %51 = vector.load %arg3[%c0_16, %c0_17, %c0_18] : memref<2x128x32xbf16, #tpu.memory_space<vmem>>, vector<1x128x32xbf16>
    %52 = vector.shape_cast %51 : vector<1x128x32xbf16> to vector<128x32xbf16>
    %cst_19 = arith.constant dense<0.000000e+00> : vector<16x32xf32>
    %53 = tpu.matmul %50, %52, %cst_19 {dimension_numbers = #tpu.dot_dimension_numbers<[1], [0], [0], [1], [0, 0, 1, 1], [], []>} : vector<16x128xbf16>, vector<128x32xbf16>, vector<16x32xf32> -> vector<16x32xf32>
    %cst_20 = arith.constant dense<0.000000e+00> : vector<16xf32>
    %54 = vector.multi_reduction <add>, %53, %cst_20 [1] : vector<16x32xf32> to vector<16xf32>
    %55 = vector.shape_cast %54 : vector<16xf32> to vector<16x1xf32>
    %cst_21 = arith.constant 3.200000e+01 : f32
    %56 = vector.broadcast %cst_21 : f32 to vector<16x1xf32>
    %57 = arith.divf %55, %56 : vector<16x1xf32>
    %58 = vector.broadcast %57 : vector<16x1xf32> to vector<16x32xf32>
    %59 = arith.subf %53, %58 : vector<16x32xf32>
    %60 = arith.mulf %59, %59 : vector<16x32xf32>
    %cst_22 = arith.constant dense<0.000000e+00> : vector<16xf32>
    %61 = vector.multi_reduction <add>, %60, %cst_22 [1] : vector<16x32xf32> to vector<16xf32>
    %62 = vector.shape_cast %61 : vector<16xf32> to vector<16x1xf32>
    %cst_23 = arith.constant 3.200000e+01 : f32
    %63 = vector.broadcast %cst_23 : f32 to vector<16x1xf32>
    %64 = arith.divf %62, %63 : vector<16x1xf32>
    %65 = vector.broadcast %57 : vector<16x1xf32> to vector<16x32xf32>
    %66 = arith.subf %53, %65 : vector<16x32xf32>
    %cst_24 = arith.constant 9.99999974E-6 : f32
    %67 = vector.broadcast %cst_24 : f32 to vector<16x1xf32>
    %68 = arith.addf %64, %67 : vector<16x1xf32>
    %69 = math.rsqrt %68 : vector<16x1xf32>
    %70 = vector.broadcast %69 : vector<16x1xf32> to vector<16x32xf32>
    %71 = arith.mulf %66, %70 : vector<16x32xf32>
    %c0_25 = arith.constant 0 : index
    %c0_26 = arith.constant 0 : index
    %c0_27 = arith.constant 0 : index
    %72 = vector.load %arg4[%c0_25, %c0_26, %c0_27] : memref<2x1x32xf32, #tpu.memory_space<vmem>>, vector<1x1x32xf32>
    %73 = vector.shape_cast %72 : vector<1x1x32xf32> to vector<1x32xf32>
    %74 = vector.broadcast %73 : vector<1x32xf32> to vector<16x32xf32>
    %75 = arith.mulf %71, %74 : vector<16x32xf32>
    %c0_28 = arith.constant 0 : index
    %c0_29 = arith.constant 0 : index
    %c0_30 = arith.constant 0 : index
    %76 = vector.load %arg5[%c0_28, %c0_29, %c0_30] : memref<2x1x32xf32, #tpu.memory_space<vmem>>, vector<1x1x32xf32>
    %77 = vector.shape_cast %76 : vector<1x1x32xf32> to vector<1x32xf32>
    %78 = vector.broadcast %77 : vector<1x32xf32> to vector<16x32xf32>
    %79 = arith.addf %75, %78 : vector<16x32xf32>
    %80 = arith.truncf %79 : vector<16x32xf32> to vector<16x32xbf16>
    %c0_31 = arith.constant 0 : index
    %c0_32 = arith.constant 0 : index
    %c0_33 = arith.constant 0 : index
    %81 = vector.load %arg6[%c0_31, %c0_32, %c0_33] : memref<2x32x64xbf16, #tpu.memory_space<vmem>>, vector<1x32x64xbf16>
    %82 = vector.shape_cast %81 : vector<1x32x64xbf16> to vector<32x64xbf16>
    %cst_34 = arith.constant dense<0.000000e+00> : vector<16x64xf32>
    %83 = tpu.matmul %80, %82, %cst_34 {dimension_numbers = #tpu.dot_dimension_numbers<[1], [0], [0], [1], [0, 0, 1, 1], [], []>} : vector<16x32xbf16>, vector<32x64xbf16>, vector<16x64xf32> -> vector<16x64xf32>
    %c0_35 = arith.constant 0 : index
    %c0_36 = arith.constant 0 : index
    %c0_37 = arith.constant 0 : index
    %84 = vector.load %arg7[%c0_35, %c0_36, %c0_37] : memref<2x1x64xf32, #tpu.memory_space<vmem>>, vector<1x1x64xf32>
    %85 = vector.shape_cast %84 : vector<1x1x64xf32> to vector<1x64xf32>
    %86 = vector.broadcast %85 : vector<1x64xf32> to vector<16x64xf32>
    %87 = arith.addf %83, %86 : vector<16x64xf32>
    %cst_38 = arith.constant 5.000000e-01 : f32
    %88 = vector.broadcast %cst_38 : f32 to vector<16x64xf32>
    %89 = arith.mulf %88, %87 : vector<16x64xf32>
    %cst_39 = arith.constant 4.471500e-02 : f32
    %90 = vector.broadcast %cst_39 : f32 to vector<16x64xf32>
    %91 = arith.mulf %90, %87 : vector<16x64xf32>
    %92 = arith.mulf %91, %87 : vector<16x64xf32>
    %93 = arith.mulf %92, %87 : vector<16x64xf32>
    %94 = arith.addf %87, %93 : vector<16x64xf32>
    %cst_40 = arith.constant 0.797884583 : f32
    %95 = vector.broadcast %cst_40 : f32 to vector<16x64xf32>
    %96 = arith.mulf %95, %94 : vector<16x64xf32>
    %97 = math.tanh %96 : vector<16x64xf32>
    %cst_41 = arith.constant 1.000000e+00 : f32
    %98 = vector.broadcast %cst_41 : f32 to vector<16x64xf32>
    %99 = arith.addf %98, %97 : vector<16x64xf32>
    %100 = arith.mulf %89, %99 : vector<16x64xf32>
    %101 = arith.truncf %100 : vector<16x64xf32> to vector<16x64xbf16>
    %c0_42 = arith.constant 0 : index
    %c0_43 = arith.constant 0 : index
    %c0_44 = arith.constant 0 : index
    %102 = vector.load %arg8[%c0_42, %c0_43, %c0_44] : memref<2x64x32xbf16, #tpu.memory_space<vmem>>, vector<1x64x32xbf16>
    %103 = vector.shape_cast %102 : vector<1x64x32xbf16> to vector<64x32xbf16>
    %cst_45 = arith.constant dense<0.000000e+00> : vector<16x32xf32>
    %104 = tpu.matmul %101, %103, %cst_45 {dimension_numbers = #tpu.dot_dimension_numbers<[1], [0], [0], [1], [0, 0, 1, 1], [], []>} : vector<16x64xbf16>, vector<64x32xbf16>, vector<16x32xf32> -> vector<16x32xf32>
    %c0_46 = arith.constant 0 : index
    %c0_47 = arith.constant 0 : index
    %c0_48 = arith.constant 0 : index
    %105 = vector.load %arg9[%c0_46, %c0_47, %c0_48] : memref<2x1x32xf32, #tpu.memory_space<vmem>>, vector<1x1x32xf32>
    %106 = vector.shape_cast %105 : vector<1x1x32xf32> to vector<1x32xf32>
    %107 = vector.broadcast %106 : vector<1x32xf32> to vector<16x32xf32>
    %108 = arith.addf %104, %107 : vector<16x32xf32>
    %109 = arith.addf %4, %108 : vector<16x32xf32>
    %110 = arith.addf %109, %53 : vector<16x32xf32>
    %111 = vector.extract_strided_slice %3 {offsets = [0, 128], sizes = [16, 128], strides = [1, 1]} : vector<16x256xf32> to vector<16x128xf32>
    %c1 = arith.constant 1 : index
    %c0_49 = arith.constant 0 : index
    %c0_50 = arith.constant 0 : index
    %112 = vector.load %arg2[%c1, %c0_49, %c0_50] : memref<2x128x128xbf16, #tpu.memory_space<vmem>>, vector<1x128x128xbf16>
    %113 = vector.shape_cast %112 : vector<1x128x128xbf16> to vector<128x128xbf16>
    %cst_51 = arith.constant 0.000000e+00 : f32
    %114 = vector.broadcast %cst_51 : f32 to vector<2x128xf32>
    %115 = vector.extract_strided_slice %111 {offsets = [0, 0], sizes = [2, 128], strides = [1, 1]} : vector<16x128xf32> to vector<2x128xf32>
    %116 = arith.truncf %114 : vector<2x128xf32> to vector<2x128xbf16>
    %cst_52 = arith.constant dense<0.000000e+00> : vector<2x128xf32>
    %117 = tpu.matmul %116, %113, %cst_52 {dimension_numbers = #tpu.dot_dimension_numbers<[1], [0], [0], [1], [0, 0, 1, 1], [], []>} : vector<2x128xbf16>, vector<128x128xbf16>, vector<2x128xf32> -> vector<2x128xf32>
    %118 = arith.addf %115, %117 : vector<2x128xf32>
    %119 = math.tanh %118 : vector<2x128xf32>
    %120 = vector.extract_strided_slice %111 {offsets = [2, 0], sizes = [2, 128], strides = [1, 1]} : vector<16x128xf32> to vector<2x128xf32>
    %121 = arith.truncf %119 : vector<2x128xf32> to vector<2x128xbf16>
    %cst_53 = arith.constant dense<0.000000e+00> : vector<2x128xf32>
    %122 = tpu.matmul %121, %113, %cst_53 {dimension_numbers = #tpu.dot_dimension_numbers<[1], [0], [0], [1], [0, 0, 1, 1], [], []>} : vector<2x128xbf16>, vector<128x128xbf16>, vector<2x128xf32> -> vector<2x128xf32>
    %123 = arith.addf %120, %122 : vector<2x128xf32>
    %124 = math.tanh %123 : vector<2x128xf32>
    %125 = vector.extract_strided_slice %111 {offsets = [4, 0], sizes = [2, 128], strides = [1, 1]} : vector<16x128xf32> to vector<2x128xf32>
    %126 = arith.truncf %124 : vector<2x128xf32> to vector<2x128xbf16>
    %cst_54 = arith.constant dense<0.000000e+00> : vector<2x128xf32>
    %127 = tpu.matmul %126, %113, %cst_54 {dimension_numbers = #tpu.dot_dimension_numbers<[1], [0], [0], [1], [0, 0, 1, 1], [], []>} : vector<2x128xbf16>, vector<128x128xbf16>, vector<2x128xf32> -> vector<2x128xf32>
    %128 = arith.addf %125, %127 : vector<2x128xf32>
    %129 = math.tanh %128 : vector<2x128xf32>
    %130 = vector.extract_strided_slice %111 {offsets = [6, 0], sizes = [2, 128], strides = [1, 1]} : vector<16x128xf32> to vector<2x128xf32>
    %131 = arith.truncf %129 : vector<2x128xf32> to vector<2x128xbf16>
    %cst_55 = arith.constant dense<0.000000e+00> : vector<2x128xf32>
    %132 = tpu.matmul %131, %113, %cst_55 {dimension_numbers = #tpu.dot_dimension_numbers<[1], [0], [0], [1], [0, 0, 1, 1], [], []>} : vector<2x128xbf16>, vector<128x128xbf16>, vector<2x128xf32> -> vector<2x128xf32>
    %133 = arith.addf %130, %132 : vector<2x128xf32>
    %134 = math.tanh %133 : vector<2x128xf32>
    %135 = vector.extract_strided_slice %111 {offsets = [8, 0], sizes = [2, 128], strides = [1, 1]} : vector<16x128xf32> to vector<2x128xf32>
    %136 = arith.truncf %134 : vector<2x128xf32> to vector<2x128xbf16>
    %cst_56 = arith.constant dense<0.000000e+00> : vector<2x128xf32>
    %137 = tpu.matmul %136, %113, %cst_56 {dimension_numbers = #tpu.dot_dimension_numbers<[1], [0], [0], [1], [0, 0, 1, 1], [], []>} : vector<2x128xbf16>, vector<128x128xbf16>, vector<2x128xf32> -> vector<2x128xf32>
    %138 = arith.addf %135, %137 : vector<2x128xf32>
    %139 = math.tanh %138 : vector<2x128xf32>
    %140 = vector.extract_strided_slice %111 {offsets = [10, 0], sizes = [2, 128], strides = [1, 1]} : vector<16x128xf32> to vector<2x128xf32>
    %141 = arith.truncf %139 : vector<2x128xf32> to vector<2x128xbf16>
    %cst_57 = arith.constant dense<0.000000e+00> : vector<2x128xf32>
    %142 = tpu.matmul %141, %113, %cst_57 {dimension_numbers = #tpu.dot_dimension_numbers<[1], [0], [0], [1], [0, 0, 1, 1], [], []>} : vector<2x128xbf16>, vector<128x128xbf16>, vector<2x128xf32> -> vector<2x128xf32>
    %143 = arith.addf %140, %142 : vector<2x128xf32>
    %144 = math.tanh %143 : vector<2x128xf32>
    %145 = vector.extract_strided_slice %111 {offsets = [12, 0], sizes = [2, 128], strides = [1, 1]} : vector<16x128xf32> to vector<2x128xf32>
    %146 = arith.truncf %144 : vector<2x128xf32> to vector<2x128xbf16>
    %cst_58 = arith.constant dense<0.000000e+00> : vector<2x128xf32>
    %147 = tpu.matmul %146, %113, %cst_58 {dimension_numbers = #tpu.dot_dimension_numbers<[1], [0], [0], [1], [0, 0, 1, 1], [], []>} : vector<2x128xbf16>, vector<128x128xbf16>, vector<2x128xf32> -> vector<2x128xf32>
    %148 = arith.addf %145, %147 : vector<2x128xf32>
    %149 = math.tanh %148 : vector<2x128xf32>
    %150 = vector.extract_strided_slice %111 {offsets = [14, 0], sizes = [2, 128], strides = [1, 1]} : vector<16x128xf32> to vector<2x128xf32>
    %151 = arith.truncf %149 : vector<2x128xf32> to vector<2x128xbf16>
    %cst_59 = arith.constant dense<0.000000e+00> : vector<2x128xf32>
    %152 = tpu.matmul %151, %113, %cst_59 {dimension_numbers = #tpu.dot_dimension_numbers<[1], [0], [0], [1], [0, 0, 1, 1], [], []>} : vector<2x128xbf16>, vector<128x128xbf16>, vector<2x128xf32> -> vector<2x128xf32>
    %153 = arith.addf %150, %152 : vector<2x128xf32>
    %154 = math.tanh %153 : vector<2x128xf32>
    %155 = tpu.concatenate %119, %124, %129, %134, %139, %144, %149, %154 in 0 : vector<2x128xf32>, vector<2x128xf32>, vector<2x128xf32>, vector<2x128xf32>, vector<2x128xf32>, vector<2x128xf32>, vector<2x128xf32>, vector<2x128xf32> -> vector<16x128xf32>
    %156 = arith.truncf %155 : vector<16x128xf32> to vector<16x128xbf16>
    %c1_60 = arith.constant 1 : index
    %c0_61 = arith.constant 0 : index
    %c0_62 = arith.constant 0 : index
    %157 = vector.load %arg3[%c1_60, %c0_61, %c0_62] : memref<2x128x32xbf16, #tpu.memory_space<vmem>>, vector<1x128x32xbf16>
    %158 = vector.shape_cast %157 : vector<1x128x32xbf16> to vector<128x32xbf16>
    %cst_63 = arith.constant dense<0.000000e+00> : vector<16x32xf32>
    %159 = tpu.matmul %156, %158, %cst_63 {dimension_numbers = #tpu.dot_dimension_numbers<[1], [0], [0], [1], [0, 0, 1, 1], [], []>} : vector<16x128xbf16>, vector<128x32xbf16>, vector<16x32xf32> -> vector<16x32xf32>
    %cst_64 = arith.constant dense<0.000000e+00> : vector<16xf32>
    %160 = vector.multi_reduction <add>, %159, %cst_64 [1] : vector<16x32xf32> to vector<16xf32>
    %161 = vector.shape_cast %160 : vector<16xf32> to vector<16x1xf32>
    %cst_65 = arith.constant 3.200000e+01 : f32
    %162 = vector.broadcast %cst_65 : f32 to vector<16x1xf32>
    %163 = arith.divf %161, %162 : vector<16x1xf32>
    %164 = vector.broadcast %163 : vector<16x1xf32> to vector<16x32xf32>
    %165 = arith.subf %159, %164 : vector<16x32xf32>
    %166 = arith.mulf %165, %165 : vector<16x32xf32>
    %cst_66 = arith.constant dense<0.000000e+00> : vector<16xf32>
    %167 = vector.multi_reduction <add>, %166, %cst_66 [1] : vector<16x32xf32> to vector<16xf32>
    %168 = vector.shape_cast %167 : vector<16xf32> to vector<16x1xf32>
    %cst_67 = arith.constant 3.200000e+01 : f32
    %169 = vector.broadcast %cst_67 : f32 to vector<16x1xf32>
    %170 = arith.divf %168, %169 : vector<16x1xf32>
    %171 = vector.broadcast %163 : vector<16x1xf32> to vector<16x32xf32>
    %172 = arith.subf %159, %171 : vector<16x32xf32>
    %cst_68 = arith.constant 9.99999974E-6 : f32
    %173 = vector.broadcast %cst_68 : f32 to vector<16x1xf32>
    %174 = arith.addf %170, %173 : vector<16x1xf32>
    %175 = math.rsqrt %174 : vector<16x1xf32>
    %176 = vector.broadcast %175 : vector<16x1xf32> to vector<16x32xf32>
    %177 = arith.mulf %172, %176 : vector<16x32xf32>
    %c1_69 = arith.constant 1 : index
    %c0_70 = arith.constant 0 : index
    %c0_71 = arith.constant 0 : index
    %178 = vector.load %arg4[%c1_69, %c0_70, %c0_71] : memref<2x1x32xf32, #tpu.memory_space<vmem>>, vector<1x1x32xf32>
    %179 = vector.shape_cast %178 : vector<1x1x32xf32> to vector<1x32xf32>
    %180 = vector.broadcast %179 : vector<1x32xf32> to vector<16x32xf32>
    %181 = arith.mulf %177, %180 : vector<16x32xf32>
    %c1_72 = arith.constant 1 : index
    %c0_73 = arith.constant 0 : index
    %c0_74 = arith.constant 0 : index
    %182 = vector.load %arg5[%c1_72, %c0_73, %c0_74] : memref<2x1x32xf32, #tpu.memory_space<vmem>>, vector<1x1x32xf32>
    %183 = vector.shape_cast %182 : vector<1x1x32xf32> to vector<1x32xf32>
    %184 = vector.broadcast %183 : vector<1x32xf32> to vector<16x32xf32>
    %185 = arith.addf %181, %184 : vector<16x32xf32>
    %186 = arith.truncf %185 : vector<16x32xf32> to vector<16x32xbf16>
    %c1_75 = arith.constant 1 : index
    %c0_76 = arith.constant 0 : index
    %c0_77 = arith.constant 0 : index
    %187 = vector.load %arg6[%c1_75, %c0_76, %c0_77] : memref<2x32x64xbf16, #tpu.memory_space<vmem>>, vector<1x32x64xbf16>
    %188 = vector.shape_cast %187 : vector<1x32x64xbf16> to vector<32x64xbf16>
    %cst_78 = arith.constant dense<0.000000e+00> : vector<16x64xf32>
    %189 = tpu.matmul %186, %188, %cst_78 {dimension_numbers = #tpu.dot_dimension_numbers<[1], [0], [0], [1], [0, 0, 1, 1], [], []>} : vector<16x32xbf16>, vector<32x64xbf16>, vector<16x64xf32> -> vector<16x64xf32>
    %c1_79 = arith.constant 1 : index
    %c0_80 = arith.constant 0 : index
    %c0_81 = arith.constant 0 : index
    %190 = vector.load %arg7[%c1_79, %c0_80, %c0_81] : memref<2x1x64xf32, #tpu.memory_space<vmem>>, vector<1x1x64xf32>
    %191 = vector.shape_cast %190 : vector<1x1x64xf32> to vector<1x64xf32>
    %192 = vector.broadcast %191 : vector<1x64xf32> to vector<16x64xf32>
    %193 = arith.addf %189, %192 : vector<16x64xf32>
    %cst_82 = arith.constant 5.000000e-01 : f32
    %194 = vector.broadcast %cst_82 : f32 to vector<16x64xf32>
    %195 = arith.mulf %194, %193 : vector<16x64xf32>
    %cst_83 = arith.constant 4.471500e-02 : f32
    %196 = vector.broadcast %cst_83 : f32 to vector<16x64xf32>
    %197 = arith.mulf %196, %193 : vector<16x64xf32>
    %198 = arith.mulf %197, %193 : vector<16x64xf32>
    %199 = arith.mulf %198, %193 : vector<16x64xf32>
    %200 = arith.addf %193, %199 : vector<16x64xf32>
    %cst_84 = arith.constant 0.797884583 : f32
    %201 = vector.broadcast %cst_84 : f32 to vector<16x64xf32>
    %202 = arith.mulf %201, %200 : vector<16x64xf32>
    %203 = math.tanh %202 : vector<16x64xf32>
    %cst_85 = arith.constant 1.000000e+00 : f32
    %204 = vector.broadcast %cst_85 : f32 to vector<16x64xf32>
    %205 = arith.addf %204, %203 : vector<16x64xf32>
    %206 = arith.mulf %195, %205 : vector<16x64xf32>
    %207 = arith.truncf %206 : vector<16x64xf32> to vector<16x64xbf16>
    %c1_86 = arith.constant 1 : index
    %c0_87 = arith.constant 0 : index
    %c0_88 = arith.constant 0 : index
    %208 = vector.load %arg8[%c1_86, %c0_87, %c0_88] : memref<2x64x32xbf16, #tpu.memory_space<vmem>>, vector<1x64x32xbf16>
    %209 = vector.shape_cast %208 : vector<1x64x32xbf16> to vector<64x32xbf16>
    %cst_89 = arith.constant dense<0.000000e+00> : vector<16x32xf32>
    %210 = tpu.matmul %207, %209, %cst_89 {dimension_numbers = #tpu.dot_dimension_numbers<[1], [0], [0], [1], [0, 0, 1, 1], [], []>} : vector<16x64xbf16>, vector<64x32xbf16>, vector<16x32xf32> -> vector<16x32xf32>
    %c1_90 = arith.constant 1 : index
    %c0_91 = arith.constant 0 : index
    %c0_92 = arith.constant 0 : index
    %211 = vector.load %arg9[%c1_90, %c0_91, %c0_92] : memref<2x1x32xf32, #tpu.memory_space<vmem>>, vector<1x1x32xf32>
    %212 = vector.shape_cast %211 : vector<1x1x32xf32> to vector<1x32xf32>
    %213 = vector.broadcast %212 : vector<1x32xf32> to vector<16x32xf32>
    %214 = arith.addf %210, %213 : vector<16x32xf32>
    %215 = arith.addf %110, %214 : vector<16x32xf32>
    %216 = arith.addf %215, %159 : vector<16x32xf32>
    %cst_93 = arith.constant 5.000000e-01 : f32
    %217 = vector.broadcast %cst_93 : f32 to vector<16x32xf32>
    %218 = arith.mulf %216, %217 : vector<16x32xf32>
    %c0_94 = arith.constant 0 : index
    %c0_95 = arith.constant 0 : index
    %219 = vector.load %arg10[%c0_94, %c0_95] : memref<16x32xf32, #tpu.memory_space<vmem>>, vector<16x32xf32>
    tpu.vector_store %arg10[%c0_94, %c0_95], %218 {strides = array<i32>} : memref<16x32xf32, #tpu.memory_space<vmem>>, vector<16x32xf32>,
    return
  }
}

</mosaic_0001>

<llo_original>
// kernel: reservoir_forward.1
$region0: #{reservoir_forward.1}
  #allocation0 [shape = 'u32[]', space=smem, size = 0x4, offset = 0x4, fixed_abs, tag = 'smem constant byte address 0x4 - core index']
  #allocation1 [shape = 'u32[144,128]{1,0:T(1,128)}', space=vmem, size = 0x12000, scoped, tag = 'internal scratch']
  %s0 = inlined_call_operand.vmem [shape: f32[16,32], index: 0, kind: input, shape index: {}]
  %s1 = inlined_call_operand.vmem [shape: bf16[32,256], index: 1, kind: input, shape index: {}]
  %s2 = inlined_call_operand.vmem [shape: bf16[2,128,128], index: 2, kind: input, shape index: {}]
  %s3 = inlined_call_operand.vmem [shape: bf16[2,128,32], index: 3, kind: input, shape index: {}]
  %s4 = inlined_call_operand.vmem [shape: f32[2,1,32], index: 4, kind: input, shape index: {}]
  %s5 = inlined_call_operand.vmem [shape: f32[2,1,32], index: 5, kind: input, shape index: {}]
  %s6 = inlined_call_operand.vmem [shape: bf16[2,32,64], index: 6, kind: input, shape index: {}]
  %s7 = inlined_call_operand.vmem [shape: f32[2,1,64], index: 7, kind: input, shape index: {}]
  %s8 = inlined_call_operand.vmem [shape: bf16[2,64,32], index: 8, kind: input, shape index: {}]
  %s9 = inlined_call_operand.vmem [shape: f32[2,1,32], index: 9, kind: input, shape index: {}]
  %s10 = inlined_call_operand.vmem [shape: f32[16,32], index: 10, kind: output, shape index: {}]
  %s11 = sld [smem:[#allocation0]]
  $region50: #{reservoir_forward.1} parent=0
    _
  %s13 = ssub.s32 1, %s11
  %s14 = scalar_select 0, %s13, %s11
  // Predicated region
  $region2: #{reservoir_forward.1} parent=0 // pred_check
    _
  $region3: #{reservoir_forward.1} parent=0 // pred_check_branch
    %16 = sbr.rel (0) target = $region5
  $region4: #{reservoir_forward.1} parent=0 // pred_region
    _
  $region5: #{reservoir_forward.1} parent=0 // pred_fallthru
    _
  // Predicated region
  $region6: #{reservoir_forward.1} parent=0 // pred_check
    _
  $region7: #{reservoir_forward.1} parent=0 // pred_check_branch
    %18 = sbr.rel (0) target = $region9
  $region8: #{reservoir_forward.1} parent=0 // pred_region
    _
  $region9: #{reservoir_forward.1} parent=0 // pred_fallthru
    _
  // Predicated region
  $region10: #{reservoir_forward.1} parent=0 // pred_check
    _
  $region11: #{reservoir_forward.1} parent=0 // pred_check_branch
    %20 = sbr.rel (0) target = $region13
  $region12: #{reservoir_forward.1} parent=0 // pred_region
    _
  $region13: #{reservoir_forward.1} parent=0 // pred_fallthru
    _
  // Predicated region
  $region14: #{reservoir_forward.1} parent=0 // pred_check
    _
  $region15: #{reservoir_forward.1} parent=0 // pred_check_branch
    %22 = sbr.rel (0) target = $region17
  $region16: #{reservoir_forward.1} parent=0 // pred_region
    _
  $region17: #{reservoir_forward.1} parent=0 // pred_fallthru
    _
  // Predicated region
  $region18: #{reservoir_forward.1} parent=0 // pred_check
    _
  $region19: #{reservoir_forward.1} parent=0 // pred_check_branch
    %24 = sbr.rel (0) target = $region21
  $region20: #{reservoir_forward.1} parent=0 // pred_region
    _
  $region21: #{reservoir_forward.1} parent=0 // pred_fallthru
    _
  // Predicated region
  $region22: #{reservoir_forward.1} parent=0 // pred_check
    _
  $region23: #{reservoir_forward.1} parent=0 // pred_check_branch
    %26 = sbr.rel (0) target = $region25
  $region24: #{reservoir_forward.1} parent=0 // pred_region
    _
  $region25: #{reservoir_forward.1} parent=0 // pred_fallthru
    _
  // Predicated region
  $region26: #{reservoir_forward.1} parent=0 // pred_check
    _
  $region27: #{reservoir_forward.1} parent=0 // pred_check_branch
    %28 = sbr.rel (0) target = $region29
  $region28: #{reservoir_forward.1} parent=0 // pred_region
    _
  $region29: #{reservoir_forward.1} parent=0 // pred_fallthru
    _
  // Predicated region
  $region30: #{reservoir_forward.1} parent=0 // pred_check
    _
  $region31: #{reservoir_forward.1} parent=0 // pred_check_branch
    %30 = sbr.rel (0) target = $region33
  $region32: #{reservoir_forward.1} parent=0 // pred_region
    _
  $region33: #{reservoir_forward.1} parent=0 // pred_fallthru
    _
  // Predicated region
  $region34: #{reservoir_forward.1} parent=0 // pred_check
    _
  $region35: #{reservoir_forward.1} parent=0 // pred_check_branch
    %32 = sbr.rel (0) target = $region37
  $region36: #{reservoir_forward.1} parent=0 // pred_region
    _
  $region37: #{reservoir_forward.1} parent=0 // pred_fallthru
    _
  // Predicated region
  $region38: #{reservoir_forward.1} parent=0 // pred_check
    _
  $region39: #{reservoir_forward.1} parent=0 // pred_check_branch
    %34 = sbr.rel (0) target = $region41
  $region40: #{reservoir_forward.1} parent=0 // pred_region
    _
  $region41: #{reservoir_forward.1} parent=0 // pred_fallthru
    _
  %v36 = vld [vmem:[%s0] sm:$0xff]
  %v37 = vld [vmem:[%s0 + $0x8] sm:$0xff]
  %v38 = vpack.c.bf16 %v37, %v36
  %v39 = vld [vmem:[%s1] sm:$0xff]
  %v40 = vld [vmem:[%s1 + $0x8] sm:$0xff]
  %v41 = vld [vmem:[%s1 + $0x10] sm:$0xff]
  %v42 = vld [vmem:[%s1 + $0x18] sm:$0xff]
  %v47 = vunpack.c.l.b16 %v39
  %v48 = vunpack.c.h.b16 %v39
  %v49 = vunpack.c.l.b16 %v40
  %v50 = vunpack.c.h.b16 %v40
  %v51 = vunpack.c.l.b16 %v41
  %v52 = vunpack.c.h.b16 %v41
  %v53 = vunpack.c.l.b16 %v42
  %v54 = vunpack.c.h.b16 %v42
  %v55 = vpack.c.b16 %v49, %v47
  %v56 = vpack.c.b16 %v50, %v48
  %v57 = vpack.c.b16 %v53, %v51
  %v58 = vpack.c.b16 %v54, %v52
  %vm63 = vcmask 261120
  %v65 = vsel %vm63, %v38, 0
  %67 = vmatprep.subr.bf16.mxu0 %v56
  %68 = vmatpush1.bf16.msra.mxu0 %v55
  %69 = vmatprep.subr.bf16.mxu0 %v58
  %70 = vmatpush1.bf16.msra.mxu0 %v57
  %71 = vmatprep.subr.bf16.mxu0 0
  %72 = vmatpush1.bf16.msra.mxu0 0
  %73 = vmatprep.subr.bf16.mxu0 0
  %74 = vmatpush1.bf16.msra.mxu0 0
  %75 = vmatprep.subr.bf16.mxu0 0
  %76 = vmatpush1.bf16.msra.mxu0 0
  %77 = vmatprep.subr.bf16.mxu0 0
  %78 = vmatpush1.bf16.msra.mxu0 0
  %79 = vmatprep.subr.bf16.mxu0 0
  %80 = vmatpush1.bf16.msra.mxu0 0
  %81 = vmatprep.subr.bf16.mxu0 0
  %82 = vmatpush1.bf16.msra.mxu0 0
  %83 = vmatprep.subr.bf16.mxu0 0
  %84 = vmatpush1.bf16.msra.mxu0 0
  %85 = vmatprep.subr.bf16.mxu0 0
  %86 = vmatpush1.bf16.msra.mxu0 0
  %87 = vmatprep.subr.bf16.mxu0 0
  %88 = vmatpush1.bf16.msra.mxu0 0
  %89 = vmatprep.subr.bf16.mxu0 0
  %90 = vmatpush1.bf16.msra.mxu0 0
  %91 = vmatprep.subr.bf16.mxu0 0
  %92 = vmatpush1.bf16.msra.mxu0 0
  %93 = vmatprep.subr.bf16.mxu0 0
  %94 = vmatpush1.bf16.msra.mxu0 0
  %95 = vmatprep.subr.bf16.mxu0 0
  %96 = vmatpush1.bf16.msra.mxu0 0
  %97 = vmatprep.subr.bf16.mxu0 0
  %98 = vmatpush1.bf16.msra.mxu0 0
  %99 = vmatprep.mubr.bf16.mxu0 0
  %100 = vmatmul.mubr.bf16.gmra.mrb[0].mxu0 %v65
  %v101 = vpop.f32.mrb[0].mxu0
  %v102 = vadd.f32 0.0, %v101
  %v103 = vpop.f32.mrb[0].mxu0
  %v104 = vadd.f32 0.0, %v103
  %v105 = vpop.f32.mrb[0].mxu0
  %v106 = vadd.f32 0.0, %v105
  %v107 = vpop.f32.mrb[0].mxu0
  %v108 = vadd.f32 0.0, %v107
  %109 = vdwg.mxu0
  %v110 = vld [vmem:[%s2] sm:$0xf]
  %v111 = vld [vmem:[%s2 + $0x4] sm:$0xf]
  %v112 = vld [vmem:[%s2 + $0x8] sm:$0xf]
  %v113 = vld [vmem:[%s2 + $0xc] sm:$0xf]
  %v114 = vld [vmem:[%s2 + $0x10] sm:$0xf]
  %v115 = vld [vmem:[%s2 + $0x14] sm:$0xf]
  %v116 = vld [vmem:[%s2 + $0x18] sm:$0xf]
  %v117 = vld [vmem:[%s2 + $0x1c] sm:$0xf]
  %v118 = vld [vmem:[%s2 + $0x20] sm:$0xf]
  %v119 = vld [vmem:[%s2 + $0x24] sm:$0xf]
  %v120 = vld [vmem:[%s2 + $0x28] sm:$0xf]
  %v121 = vld [vmem:[%s2 + $0x2c] sm:$0xf]
  %v122 = vld [vmem:[%s2 + $0x30] sm:$0xf]
  %v123 = vld [vmem:[%s2 + $0x34] sm:$0xf]
  %v124 = vld [vmem:[%s2 + $0x38] sm:$0xf]
  %v125 = vld [vmem:[%s2 + $0x3c] sm:$0xf]
  %v142 = vunpack.c.l.b16 %v110
  %v143 = vunpack.c.l.b16 %v111
  %v144 = vunpack.c.l.b16 %v112
  %v145 = vunpack.c.l.b16 %v113
  %v146 = vunpack.c.l.b16 %v114
  %v147 = vunpack.c.l.b16 %v115
  %v148 = vunpack.c.l.b16 %v116
  %v149 = vunpack.c.l.b16 %v117
  %v150 = vunpack.c.l.b16 %v118
  %v151 = vunpack.c.l.b16 %v119
  %v152 = vunpack.c.l.b16 %v120
  %v153 = vunpack.c.l.b16 %v121
  %v154 = vunpack.c.l.b16 %v122
  %v155 = vunpack.c.l.b16 %v123
  %v156 = vunpack.c.l.b16 %v124
  %v157 = vunpack.c.l.b16 %v125
  %v158 = vpack.c.b16 %v143, %v142
  %v159 = vpack.c.b16 %v145, %v144
  %v160 = vpack.c.b16 %v147, %v146
  %v161 = vpack.c.b16 %v149, %v148
  %v162 = vpack.c.b16 %v151, %v150
  %v163 = vpack.c.b16 %v153, %v152
  %v164 = vpack.c.b16 %v155, %v154
  %v165 = vpack.c.b16 %v157, %v156
  %174 = vmatprep.subr.bf16.mxu0 0
  %175 = vmatpush1.bf16.msra.mxu0 %v158
  %176 = vmatprep.subr.bf16.mxu0 0
  %177 = vmatpush1.bf16.msra.mxu0 %v159
  %178 = vmatprep.subr.bf16.mxu0 0
  %179 = vmatpush1.bf16.msra.mxu0 %v160
  %180 = vmatprep.subr.bf16.mxu0 0
  %181 = vmatpush1.bf16.msra.mxu0 %v161
  %182 = vmatprep.subr.bf16.mxu0 0
  %183 = vmatpush1.bf16.msra.mxu0 %v162
  %184 = vmatprep.subr.bf16.mxu0 0
  %185 = vmatpush1.bf16.msra.mxu0 %v163
  %186 = vmatprep.subr.bf16.mxu0 0
  %187 = vmatpush1.bf16.msra.mxu0 %v164
  %188 = vmatprep.subr.bf16.mxu0 0
  %189 = vmatpush1.bf16.msra.mxu0 %v165
  %190 = vmatprep.subr.bf16.mxu0 0
  %191 = vmatpush1.bf16.msra.mxu0 0
  %192 = vmatprep.subr.bf16.mxu0 0
  %193 = vmatpush1.bf16.msra.mxu0 0
  %194 = vmatprep.subr.bf16.mxu0 0
  %195 = vmatpush1.bf16.msra.mxu0 0
  %196 = vmatprep.subr.bf16.mxu0 0
  %197 = vmatpush1.bf16.msra.mxu0 0
  %198 = vmatprep.subr.bf16.mxu0 0
  %199 = vmatpush1.bf16.msra.mxu0 0
  %200 = vmatprep.subr.bf16.mxu0 0
  %201 = vmatpush1.bf16.msra.mxu0 0
  %202 = vmatprep.subr.bf16.mxu0 0
  %203 = vmatpush1.bf16.msra.mxu0 0
  %204 = vmatprep.subr.bf16.mxu0 0
  %205 = vmatpush1.bf16.msra.mxu0 0
  %206 = vmatprep.mubr.bf16.mxu0 0
  %207 = vmatmul.mubr.bf16.gmra.mrb[0].mxu0 0
  %v208 = vpop.f32.mrb[0].mxu0
  %v209 = vadd.f32 0.0, %v208
  %v210 = vpop.f32.mrb[0].mxu0
  %v211 = vpop.f32.mrb[0].mxu0
  %v212 = vpop.f32.mrb[0].mxu0
  %213 = vdwg.mxu0
  %v214 = vadd.f32 %v102, %v209
  %v215 = vtanh.pop %v214
  %v216 = vpack.c.bf16 %v215, %v215
  %217 = vmatprep.subr.bf16.mxu0 0
  %218 = vmatpush1.bf16.msra.mxu0 %v158
  %219 = vmatprep.subr.bf16.mxu0 0
  %220 = vmatpush1.bf16.msra.mxu0 %v159
  %221 = vmatprep.subr.bf16.mxu0 0
  %222 = vmatpush1.bf16.msra.mxu0 %v160
  %223 = vmatprep.subr.bf16.mxu0 0
  %224 = vmatpush1.bf16.msra.mxu0 %v161
  %225 = vmatprep.subr.bf16.mxu0 0
  %226 = vmatpush1.bf16.msra.mxu0 %v162
  %227 = vmatprep.subr.bf16.mxu0 0
  %228 = vmatpush1.bf16.msra.mxu0 %v163
  %229 = vmatprep.subr.bf16.mxu0 0
  %230 = vmatpush1.bf16.msra.mxu0 %v164
  %231 = vmatprep.subr.bf16.mxu0 0
  %232 = vmatpush1.bf16.msra.mxu0 %v165
  %233 = vmatprep.subr.bf16.mxu0 0
  %234 = vmatpush1.bf16.msra.mxu0 0
  %235 = vmatprep.subr.bf16.mxu0 0
  %236 = vmatpush1.bf16.msra.mxu0 0
  %237 = vmatprep.subr.bf16.mxu0 0
  %238 = vmatpush1.bf16.msra.mxu0 0
  %239 = vmatprep.subr.bf16.mxu0 0
  %240 = vmatpush1.bf16.msra.mxu0 0
  %241 = vmatprep.subr.bf16.mxu0 0
  %242 = vmatpush1.bf16.msra.mxu0 0
  %243 = vmatprep.subr.bf16.mxu0 0
  %244 = vmatpush1.bf16.msra.mxu0 0
  %245 = vmatprep.subr.bf16.mxu0 0
  %246 = vmatpush1.bf16.msra.mxu0 0
  %247 = vmatprep.subr.bf16.mxu0 0
  %248 = vmatpush1.bf16.msra.mxu0 0
  %249 = vmatprep.mubr.bf16.mxu0 0
  %250 = vmatmul.mubr.bf16.gmra.mrb[0].mxu0 %v216
  %v251 = vpop.f32.mrb[0].mxu0
  %v252 = vadd.f32 0.0, %v251
  %v253 = vpop.f32.mrb[0].mxu0
  %v254 = vpop.f32.mrb[0].mxu0
  %v255 = vpop.f32.mrb[0].mxu0
  %256 = vdwg.mxu0
  %v258 = vrot.slane %v252, 6
  %v260 = vadd.f32 %v102, %v258
  %v261 = vtanh.pop %v260
  %v262 = vpack.c.bf16 %v261, %v261
  %v264 = vrot.slane %v262, 1
  %266 = vmatprep.subr.bf16.mxu0 0
  %267 = vmatpush1.bf16.msra.mxu0 %v158
  %268 = vmatprep.subr.bf16.mxu0 0
  %269 = vmatpush1.bf16.msra.mxu0 %v159
  %270 = vmatprep.subr.bf16.mxu0 0
  %271 = vmatpush1.bf16.msra.mxu0 %v160
  %272 = vmatprep.subr.bf16.mxu0 0
  %273 = vmatpush1.bf16.msra.mxu0 %v161
  %274 = vmatprep.subr.bf16.mxu0 0
  %275 = vmatpush1.bf16.msra.mxu0 %v162
  %276 = vmatprep.subr.bf16.mxu0 0
  %277 = vmatpush1.bf16.msra.mxu0 %v163
  %278 = vmatprep.subr.bf16.mxu0 0
  %279 = vmatpush1.bf16.msra.mxu0 %v164
  %280 = vmatprep.subr.bf16.mxu0 0
  %281 = vmatpush1.bf16.msra.mxu0 %v165
  %282 = vmatprep.subr.bf16.mxu0 0
  %283 = vmatpush1.bf16.msra.mxu0 0
  %284 = vmatprep.subr.bf16.mxu0 0
  %285 = vmatpush1.bf16.msra.mxu0 0
  %286 = vmatprep.subr.bf16.mxu0 0
  %287 = vmatpush1.bf16.msra.mxu0 0
  %288 = vmatprep.subr.bf16.mxu0 0
  %289 = vmatpush1.bf16.msra.mxu0 0
  %290 = vmatprep.subr.bf16.mxu0 0
  %291 = vmatpush1.bf16.msra.mxu0 0
  %292 = vmatprep.subr.bf16.mxu0 0
  %293 = vmatpush1.bf16.msra.mxu0 0
  %294 = vmatprep.subr.bf16.mxu0 0
  %295 = vmatpush1.bf16.msra.mxu0 0
  %296 = vmatprep.subr.bf16.mxu0 0
  %297 = vmatpush1.bf16.msra.mxu0 0
  %298 = vmatprep.mubr.bf16.mxu0 0
  %299 = vmatmul.mubr.bf16.gmra.mrb[0].mxu0 %v264
  %v300 = vpop.f32.mrb[0].mxu0
  %v301 = vadd.f32 0.0, %v300
  %v302 = vpop.f32.mrb[0].mxu0
  %v303 = vpop.f32.mrb[0].mxu0
  %v304 = vpop.f32.mrb[0].mxu0
  %305 = vdwg.mxu0
  %v307 = vrot.slane %v301, 4
  %v309 = vadd.f32 %v102, %v307
  %v310 = vtanh.pop %v309
  %v311 = vpack.c.bf16 %v310, %v310
  %v313 = vrot.slane %v311, 2
  %315 = vmatprep.subr.bf16.mxu0 0
  %316 = vmatpush1.bf16.msra.mxu0 %v158
  %317 = vmatprep.subr.bf16.mxu0 0
  %318 = vmatpush1.bf16.msra.mxu0 %v159
  %319 = vmatprep.subr.bf16.mxu0 0
  %320 = vmatpush1.bf16.msra.mxu0 %v160
  %321 = vmatprep.subr.bf16.mxu0 0
  %322 = vmatpush1.bf16.msra.mxu0 %v161
  %323 = vmatprep.subr.bf16.mxu0 0
  %324 = vmatpush1.bf16.msra.mxu0 %v162
  %325 = vmatprep.subr.bf16.mxu0 0
  %326 = vmatpush1.bf16.msra.mxu0 %v163
  %327 = vmatprep.subr.bf16.mxu0 0
  %328 = vmatpush1.bf16.msra.mxu0 %v164
  %329 = vmatprep.subr.bf16.mxu0 0
  %330 = vmatpush1.bf16.msra.mxu0 %v165
  %331 = vmatprep.subr.bf16.mxu0 0
  %332 = vmatpush1.bf16.msra.mxu0 0
  %333 = vmatprep.subr.bf16.mxu0 0
  %334 = vmatpush1.bf16.msra.mxu0 0
  %335 = vmatprep.subr.bf16.mxu0 0
  %336 = vmatpush1.bf16.msra.mxu0 0
  %337 = vmatprep.subr.bf16.mxu0 0
  %338 = vmatpush1.bf16.msra.mxu0 0
  %339 = vmatprep.subr.bf16.mxu0 0
  %340 = vmatpush1.bf16.msra.mxu0 0
  %341 = vmatprep.subr.bf16.mxu0 0
  %342 = vmatpush1.bf16.msra.mxu0 0
  %343 = vmatprep.subr.bf16.mxu0 0
  %344 = vmatpush1.bf16.msra.mxu0 0
  %345 = vmatprep.subr.bf16.mxu0 0
  %346 = vmatpush1.bf16.msra.mxu0 0
  %347 = vmatprep.mubr.bf16.mxu0 0
  %348 = vmatmul.mubr.bf16.gmra.mrb[0].mxu0 %v313
  %v349 = vpop.f32.mrb[0].mxu0
  %v350 = vadd.f32 0.0, %v349
  %v351 = vpop.f32.mrb[0].mxu0
  %v352 = vpop.f32.mrb[0].mxu0
  %v353 = vpop.f32.mrb[0].mxu0
  %354 = vdwg.mxu0
  %v356 = vrot.slane %v350, 2
  %v358 = vadd.f32 %v102, %v356
  %v359 = vtanh.pop %v358
  %v360 = vpack.c.bf16 %v359, %v359
  %v362 = vrot.slane %v360, 3
  %364 = vmatprep.subr.bf16.mxu0 0
  %365 = vmatpush1.bf16.msra.mxu0 %v158
  %366 = vmatprep.subr.bf16.mxu0 0
  %367 = vmatpush1.bf16.msra.mxu0 %v159
  %368 = vmatprep.subr.bf16.mxu0 0
  %369 = vmatpush1.bf16.msra.mxu0 %v160
  %370 = vmatprep.subr.bf16.mxu0 0
  %371 = vmatpush1.bf16.msra.mxu0 %v161
  %372 = vmatprep.subr.bf16.mxu0 0
  %373 = vmatpush1.bf16.msra.mxu0 %v162
  %374 = vmatprep.subr.bf16.mxu0 0
  %375 = vmatpush1.bf16.msra.mxu0 %v163
  %376 = vmatprep.subr.bf16.mxu0 0
  %377 = vmatpush1.bf16.msra.mxu0 %v164
  %378 = vmatprep.subr.bf16.mxu0 0
  %379 = vmatpush1.bf16.msra.mxu0 %v165
  %380 = vmatprep.subr.bf16.mxu0 0
  %381 = vmatpush1.bf16.msra.mxu0 0
  %382 = vmatprep.subr.bf16.mxu0 0
  %383 = vmatpush1.bf16.msra.mxu0 0
  %384 = vmatprep.subr.bf16.mxu0 0
  %385 = vmatpush1.bf16.msra.mxu0 0
  %386 = vmatprep.subr.bf16.mxu0 0
  %387 = vmatpush1.bf16.msra.mxu0 0
  %388 = vmatprep.subr.bf16.mxu0 0
  %389 = vmatpush1.bf16.msra.mxu0 0
  %390 = vmatprep.subr.bf16.mxu0 0
  %391 = vmatpush1.bf16.msra.mxu0 0
  %392 = vmatprep.subr.bf16.mxu0 0
  %393 = vmatpush1.bf16.msra.mxu0 0
  %394 = vmatprep.subr.bf16.mxu0 0
  %395 = vmatpush1.bf16.msra.mxu0 0
  %396 = vmatprep.mubr.bf16.mxu0 0
  %397 = vmatmul.mubr.bf16.gmra.mrb[0].mxu0 %v362
  %v398 = vpop.f32.mrb[0].mxu0
  %v399 = vadd.f32 0.0, %v398
  %v400 = vpop.f32.mrb[0].mxu0
  %v401 = vpop.f32.mrb[0].mxu0
  %v402 = vpop.f32.mrb[0].mxu0
  %403 = vdwg.mxu0
  %v404 = vadd.f32 %v106, %v399
  %v405 = vtanh.pop %v404
  %v406 = vpack.c.bf16 %v405, %v405
  %407 = vmatprep.subr.bf16.mxu0 0
  %408 = vmatpush1.bf16.msra.mxu0 %v158
  %409 = vmatprep.subr.bf16.mxu0 0
  %410 = vmatpush1.bf16.msra.mxu0 %v159
  %411 = vmatprep.subr.bf16.mxu0 0
  %412 = vmatpush1.bf16.msra.mxu0 %v160
  %413 = vmatprep.subr.bf16.mxu0 0
  %414 = vmatpush1.bf16.msra.mxu0 %v161
  %415 = vmatprep.subr.bf16.mxu0 0
  %416 = vmatpush1.bf16.msra.mxu0 %v162
  %417 = vmatprep.subr.bf16.mxu0 0
  %418 = vmatpush1.bf16.msra.mxu0 %v163
  %419 = vmatprep.subr.bf16.mxu0 0
  %420 = vmatpush1.bf16.msra.mxu0 %v164
  %421 = vmatprep.subr.bf16.mxu0 0
  %422 = vmatpush1.bf16.msra.mxu0 %v165
  %423 = vmatprep.subr.bf16.mxu0 0
  %424 = vmatpush1.bf16.msra.mxu0 0
  %425 = vmatprep.subr.bf16.mxu0 0
  %426 = vmatpush1.bf16.msra.mxu0 0
  %427 = vmatprep.subr.bf16.mxu0 0
  %428 = vmatpush1.bf16.msra.mxu0 0
  %429 = vmatprep.subr.bf16.mxu0 0
  %430 = vmatpush1.bf16.msra.mxu0 0
  %431 = vmatprep.subr.bf16.mxu0 0
  %432 = vmatpush1.bf16.msra.mxu0 0
  %433 = vmatprep.subr.bf16.mxu0 0
  %434 = vmatpush1.bf16.msra.mxu0 0
  %435 = vmatprep.subr.bf16.mxu0 0
  %436 = vmatpush1.bf16.msra.mxu0 0
  %437 = vmatprep.subr.bf16.mxu0 0
  %438 = vmatpush1.bf16.msra.mxu0 0
  %439 = vmatprep.mubr.bf16.mxu0 0
  %440 = vmatmul.mubr.bf16.gmra.mrb[0].mxu0 %v406
  %v441 = vpop.f32.mrb[0].mxu0
  %v442 = vadd.f32 0.0, %v441
  %v443 = vpop.f32.mrb[0].mxu0
  %v444 = vpop.f32.mrb[0].mxu0
  %v445 = vpop.f32.mrb[0].mxu0
  %446 = vdwg.mxu0
  %v448 = vrot.slane %v442, 6
  %v450 = vadd.f32 %v106, %v448
  %v451 = vtanh.pop %v450
  %v452 = vpack.c.bf16 %v451, %v451
  %v454 = vrot.slane %v452, 1
  %456 = vmatprep.subr.bf16.mxu0 0
  %457 = vmatpush1.bf16.msra.mxu0 %v158
  %458 = vmatprep.subr.bf16.mxu0 0
  %459 = vmatpush1.bf16.msra.mxu0 %v159
  %460 = vmatprep.subr.bf16.mxu0 0
  %461 = vmatpush1.bf16.msra.mxu0 %v160
  %462 = vmatprep.subr.bf16.mxu0 0
  %463 = vmatpush1.bf16.msra.mxu0 %v161
  %464 = vmatprep.subr.bf16.mxu0 0
  %465 = vmatpush1.bf16.msra.mxu0 %v162
  %466 = vmatprep.subr.bf16.mxu0 0
  %467 = vmatpush1.bf16.msra.mxu0 %v163
  %468 = vmatprep.subr.bf16.mxu0 0
  %469 = vmatpush1.bf16.msra.mxu0 %v164
  %470 = vmatprep.subr.bf16.mxu0 0
  %471 = vmatpush1.bf16.msra.mxu0 %v165
  %472 = vmatprep.subr.bf16.mxu0 0
  %473 = vmatpush1.bf16.msra.mxu0 0
  %474 = vmatprep.subr.bf16.mxu0 0
  %475 = vmatpush1.bf16.msra.mxu0 0
  %476 = vmatprep.subr.bf16.mxu0 0
  %477 = vmatpush1.bf16.msra.mxu0 0
  %478 = vmatprep.subr.bf16.mxu0 0
  %479 = vmatpush1.bf16.msra.mxu0 0
  %480 = vmatprep.subr.bf16.mxu0 0
  %481 = vmatpush1.bf16.msra.mxu0 0
  %482 = vmatprep.subr.bf16.mxu0 0
  %483 = vmatpush1.bf16.msra.mxu0 0
  %484 = vmatprep.subr.bf16.mxu0 0
  %485 = vmatpush1.bf16.msra.mxu0 0
  %486 = vmatprep.subr.bf16.mxu0 0
  %487 = vmatpush1.bf16.msra.mxu0 0
  %488 = vmatprep.mubr.bf16.mxu0 0
  %489 = vmatmul.mubr.bf16.gmra.mrb[0].mxu0 %v454
  %v490 = vpop.f32.mrb[0].mxu0
  %v491 = vadd.f32 0.0, %v490
  %v492 = vpop.f32.mrb[0].mxu0
  %v493 = vpop.f32.mrb[0].mxu0
  %v494 = vpop.f32.mrb[0].mxu0
  %495 = vdwg.mxu0
  %v497 = vrot.slane %v491, 4
  %v499 = vadd.f32 %v106, %v497
  %v500 = vtanh.pop %v499
  %v501 = vpack.c.bf16 %v500, %v500
  %v503 = vrot.slane %v501, 2
  %505 = vmatprep.subr.bf16.mxu0 0
  %506 = vmatpush1.bf16.msra.mxu0 %v158
  %507 = vmatprep.subr.bf16.mxu0 0
  %508 = vmatpush1.bf16.msra.mxu0 %v159
  %509 = vmatprep.subr.bf16.mxu0 0
  %510 = vmatpush1.bf16.msra.mxu0 %v160
  %511 = vmatprep.subr.bf16.mxu0 0
  %512 = vmatpush1.bf16.msra.mxu0 %v161
  %513 = vmatprep.subr.bf16.mxu0 0
  %514 = vmatpush1.bf16.msra.mxu0 %v162
  %515 = vmatprep.subr.bf16.mxu0 0
  %516 = vmatpush1.bf16.msra.mxu0 %v163
  %517 = vmatprep.subr.bf16.mxu0 0
  %518 = vmatpush1.bf16.msra.mxu0 %v164
  %519 = vmatprep.subr.bf16.mxu0 0
  %520 = vmatpush1.bf16.msra.mxu0 %v165
  %521 = vmatprep.subr.bf16.mxu0 0
  %522 = vmatpush1.bf16.msra.mxu0 0
  %523 = vmatprep.subr.bf16.mxu0 0
  %524 = vmatpush1.bf16.msra.mxu0 0
  %525 = vmatprep.subr.bf16.mxu0 0
  %526 = vmatpush1.bf16.msra.mxu0 0
  %527 = vmatprep.subr.bf16.mxu0 0
  %528 = vmatpush1.bf16.msra.mxu0 0
  %529 = vmatprep.subr.bf16.mxu0 0
  %530 = vmatpush1.bf16.msra.mxu0 0
  %531 = vmatprep.subr.bf16.mxu0 0
  %532 = vmatpush1.bf16.msra.mxu0 0
  %533 = vmatprep.subr.bf16.mxu0 0
  %534 = vmatpush1.bf16.msra.mxu0 0
  %535 = vmatprep.subr.bf16.mxu0 0
  %536 = vmatpush1.bf16.msra.mxu0 0
  %537 = vmatprep.mubr.bf16.mxu0 0
  %538 = vmatmul.mubr.bf16.gmra.mrb[0].mxu0 %v503
  %v539 = vpop.f32.mrb[0].mxu0
  %v540 = vadd.f32 0.0, %v539
  %v541 = vpop.f32.mrb[0].mxu0
  %v542 = vpop.f32.mrb[0].mxu0
  %v543 = vpop.f32.mrb[0].mxu0
  %544 = vdwg.mxu0
  %v546 = vrot.slane %v540, 2
  %v548 = vadd.f32 %v106, %v546
  %v549 = vtanh.pop %v548
  %vm550 = vcmask 1041408
  %v551 = vsel %vm550, %v215, %v261
  %vm552 = vcmask 1043456
  %v553 = vsel %vm552, %v551, %v310
  %vm554 = vcmask 1045504
  %v555 = vsel %vm554, %v553, %v359
  %v556 = vsel %vm550, %v405, %v451
  %v557 = vsel %vm552, %v556, %v500
  %v558 = vsel %vm554, %v557, %v549
  %v559 = vpack.c.bf16 %v558, %v555
  %v560 = vld [vmem:[%s3] sm:$0xf]
  %v561 = vld [vmem:[%s3 + $0x4] sm:$0xf]
  %v562 = vld [vmem:[%s3 + $0x8] sm:$0xf]
  %v563 = vld [vmem:[%s3 + $0xc] sm:$0xf]
  %v564 = vld [vmem:[%s3 + $0x10] sm:$0xf]
  %v565 = vld [vmem:[%s3 + $0x14] sm:$0xf]
  %v566 = vld [vmem:[%s3 + $0x18] sm:$0xf]
  %v567 = vld [vmem:[%s3 + $0x1c] sm:$0xf]
  %v568 = vld [vmem:[%s3 + $0x20] sm:$0xf]
  %v569 = vld [vmem:[%s3 + $0x24] sm:$0xf]
  %v570 = vld [vmem:[%s3 + $0x28] sm:$0xf]
  %v571 = vld [vmem:[%s3 + $0x2c] sm:$0xf]
  %v572 = vld [vmem:[%s3 + $0x30] sm:$0xf]
  %v573 = vld [vmem:[%s3 + $0x34] sm:$0xf]
  %v574 = vld [vmem:[%s3 + $0x38] sm:$0xf]
  %v575 = vld [vmem:[%s3 + $0x3c] sm:$0xf]
  %v592 = vunpack.c.l.b16 %v560
  %v593 = vunpack.c.l.b16 %v561
  %v594 = vunpack.c.l.b16 %v562
  %v595 = vunpack.c.l.b16 %v563
  %v596 = vunpack.c.l.b16 %v564
  %v597 = vunpack.c.l.b16 %v565
  %v598 = vunpack.c.l.b16 %v566
  %v599 = vunpack.c.l.b16 %v567
  %v600 = vunpack.c.l.b16 %v568
  %v601 = vunpack.c.l.b16 %v569
  %v602 = vunpack.c.l.b16 %v570
  %v603 = vunpack.c.l.b16 %v571
  %v604 = vunpack.c.l.b16 %v572
  %v605 = vunpack.c.l.b16 %v573
  %v606 = vunpack.c.l.b16 %v574
  %v607 = vunpack.c.l.b16 %v575
  %v608 = vpack.c.b16 %v593, %v592
  %v609 = vpack.c.b16 %v595, %v594
  %v610 = vpack.c.b16 %v597, %v596
  %v611 = vpack.c.b16 %v599, %v598
  %v612 = vpack.c.b16 %v601, %v600
  %v613 = vpack.c.b16 %v603, %v602
  %v614 = vpack.c.b16 %v605, %v604
  %v615 = vpack.c.b16 %v607, %v606
  %624 = vmatprep.subr.bf16.mxu0 0
  %625 = vmatpush1.bf16.msra.mxu0 %v608
  %626 = vmatprep.subr.bf16.mxu0 0
  %627 = vmatpush1.bf16.msra.mxu0 %v609
  %628 = vmatprep.subr.bf16.mxu0 0
  %629 = vmatpush1.bf16.msra.mxu0 %v610
  %630 = vmatprep.subr.bf16.mxu0 0
  %631 = vmatpush1.bf16.msra.mxu0 %v611
  %632 = vmatprep.subr.bf16.mxu0 0
  %633 = vmatpush1.bf16.msra.mxu0 %v612
  %634 = vmatprep.subr.bf16.mxu0 0
  %635 = vmatpush1.bf16.msra.mxu0 %v613
  %636 = vmatprep.subr.bf16.mxu0 0
  %637 = vmatpush1.bf16.msra.mxu0 %v614
  %638 = vmatprep.subr.bf16.mxu0 0
  %639 = vmatpush1.bf16.msra.mxu0 %v615
  %640 = vmatprep.subr.bf16.mxu0 0
  %641 = vmatpush1.bf16.msra.mxu0 0
  %642 = vmatprep.subr.bf16.mxu0 0
  %643 = vmatpush1.bf16.msra.mxu0 0
  %644 = vmatprep.subr.bf16.mxu0 0
  %645 = vmatpush1.bf16.msra.mxu0 0
  %646 = vmatprep.subr.bf16.mxu0 0
  %647 = vmatpush1.bf16.msra.mxu0 0
  %648 = vmatprep.subr.bf16.mxu0 0
  %649 = vmatpush1.bf16.msra.mxu0 0
  %650 = vmatprep.subr.bf16.mxu0 0
  %651 = vmatpush1.bf16.msra.mxu0 0
  %652 = vmatprep.subr.bf16.mxu0 0
  %653 = vmatpush1.bf16.msra.mxu0 0
  %654 = vmatprep.subr.bf16.mxu0 0
  %655 = vmatpush1.bf16.msra.mxu0 0
  %656 = vmatprep.mubr.bf16.mxu0 0
  %657 = vmatmul.mubr.bf16.gmra.mrb[0].mxu0 %v559
  %v658 = vpop.f32.mrb[0].mxu0
  %v659 = vadd.f32 0.0, %v658
  %v660 = vpop.f32.mrb[0].mxu0
  %v661 = vpop.f32.mrb[0].mxu0
  %v662 = vadd.f32 0.0, %v661
  %v663 = vpop.f32.mrb[0].mxu0
  %664 = vdwg.mxu0
  %v665 = vsel %vm63, %v659, 0.0
  %666 = vadd.xlane.f32.xlu0 %v665
  %v667 = vpop.xlane.xlu0 %666
  %v668 = vsel %vm63, %v662, 0.0
  %669 = vadd.xlane.f32.xlu0 %v668
  %v670 = vpop.xlane.xlu0 %669
  %v671 = vrcp.pop 32.0
  %v672 = vmul.f32 %v667, %v671
  %v673 = vmul.f32 %v670, %v671
  %v674 = vsub.f32 %v659, %v672
  %v675 = vsub.f32 %v662, %v673
  %v676 = vmul.f32 %v674, %v674
  %v677 = vmul.f32 %v675, %v675
  %v678 = vsel %vm63, %v676, 0.0
  %679 = vadd.xlane.f32.xlu0 %v678
  %v680 = vpop.xlane.xlu0 %679
  %v681 = vsel %vm63, %v677, 0.0
  %682 = vadd.xlane.f32.xlu0 %v681
  %v683 = vpop.xlane.xlu0 %682
  %v684 = vmul.f32 %v680, %v671
  %v685 = vmul.f32 %v683, %v671
  %v686 = vadd.f32 %v684, 1e-05
  %v687 = vadd.f32 %v685, 1e-05
  %v688 = vrsqrt.pop %v686
  %v689 = vrsqrt.pop %v687
  %v690 = vmul.f32 %v674, %v688
  %v691 = vmul.f32 %v675, %v689
  %v692 = vld [vmem:[%s4] sm:$0x1]
  %v694 = vlaneseq
  %v695 = vshrl.u32 %v694, 7
  %v696 = vsub.s32 0, %v695
  %v697 = vrot.slane %v692, %v696
  %v699 = vmul.f32 %v690, %v697
  %v700 = vmul.f32 %v691, %v697
  %v701 = vld [vmem:[%s5] sm:$0x1]
  %v703 = vlaneseq
  %v704 = vshrl.u32 %v703, 7
  %v705 = vsub.s32 0, %v704
  %v706 = vrot.slane %v701, %v705
  %v708 = vadd.f32 %v699, %v706
  %v709 = vadd.f32 %v700, %v706
  %v710 = vpack.c.bf16 %v709, %v708
  %v711 = vld [vmem:[%s6] sm:$0xf]
  %v712 = vld [vmem:[%s6 + $0x4] sm:$0xf]
  %v713 = vld [vmem:[%s6 + $0x8] sm:$0xf]
  %v714 = vld [vmem:[%s6 + $0xc] sm:$0xf]
  %v715 = vld [vmem:[%s7] sm:$0x1]
  %v717 = vlaneseq
  %v718 = vshrl.u32 %v717, 7
  %v719 = vsub.s32 0, %v718
  %v720 = vrot.slane %v715, %v719
  %v726 = vunpack.c.l.b16 %v711
  %v727 = vunpack.c.l.b16 %v712
  %v728 = vunpack.c.l.b16 %v713
  %v729 = vunpack.c.l.b16 %v714
  %v730 = vpack.c.b16 %v727, %v726
  %v731 = vpack.c.b16 %v729, %v728
  %v735 = vsel %vm63, %v710, 0
  %737 = vmatprep.subr.bf16.mxu0 0
  %738 = vmatpush1.bf16.msra.mxu0 %v730
  %739 = vmatprep.subr.bf16.mxu0 0
  %740 = vmatpush1.bf16.msra.mxu0 %v731
  %741 = vmatprep.subr.bf16.mxu0 0
  %742 = vmatpush1.bf16.msra.mxu0 0
  %743 = vmatprep.subr.bf16.mxu0 0
  %744 = vmatpush1.bf16.msra.mxu0 0
  %745 = vmatprep.subr.bf16.mxu0 0
  %746 = vmatpush1.bf16.msra.mxu0 0
  %747 = vmatprep.subr.bf16.mxu0 0
  %748 = vmatpush1.bf16.msra.mxu0 0
  %749 = vmatprep.subr.bf16.mxu0 0
  %750 = vmatpush1.bf16.msra.mxu0 0
  %751 = vmatprep.subr.bf16.mxu0 0
  %752 = vmatpush1.bf16.msra.mxu0 0
  %753 = vmatprep.subr.bf16.mxu0 0
  %754 = vmatpush1.bf16.msra.mxu0 0
  %755 = vmatprep.subr.bf16.mxu0 0
  %756 = vmatpush1.bf16.msra.mxu0 0
  %757 = vmatprep.subr.bf16.mxu0 0
  %758 = vmatpush1.bf16.msra.mxu0 0
  %759 = vmatprep.subr.bf16.mxu0 0
  %760 = vmatpush1.bf16.msra.mxu0 0
  %761 = vmatprep.subr.bf16.mxu0 0
  %762 = vmatpush1.bf16.msra.mxu0 0
  %763 = vmatprep.subr.bf16.mxu0 0
  %764 = vmatpush1.bf16.msra.mxu0 0
  %765 = vmatprep.subr.bf16.mxu0 0
  %766 = vmatpush1.bf16.msra.mxu0 0
  %767 = vmatprep.subr.bf16.mxu0 0
  %768 = vmatpush1.bf16.msra.mxu0 0
  %769 = vmatprep.mubr.bf16.mxu0 0
  %770 = vmatmul.mubr.bf16.gmra.mrb[0].mxu0 %v735
  %v771 = vpop.f32.mrb[0].mxu0
  %v772 = vadd.f32 %v720, %v771
  %v773 = vpop.f32.mrb[0].mxu0
  %v774 = vpop.f32.mrb[0].mxu0
  %v775 = vadd.f32 %v720, %v774
  %v776 = vpop.f32.mrb[0].mxu0
  %777 = vdwg.mxu0
  %v778 = vmul.f32 %v772, 0.5
  %v779 = vmul.f32 %v775, 0.5
  %v780 = vmul.f32 %v772, 0.044715
  %v781 = vmul.f32 %v775, 0.044715
  %v782 = vmul.f32 %v780, %v772
  %v783 = vmul.f32 %v781, %v775
  %v784 = vmul.f32 %v782, %v772
  %v785 = vmul.f32 %v783, %v775
  %v786 = vadd.f32 %v772, %v784
  %v787 = vadd.f32 %v775, %v785
  %v788 = vmul.f32 %v786, 0.7978846
  %v789 = vmul.f32 %v787, 0.7978846
  %v790 = vtanh.pop %v788
  %v791 = vtanh.pop %v789
  %v792 = vadd.f32 %v790, 1.0
  %v793 = vadd.f32 %v791, 1.0
  %v794 = vmul.f32 %v778, %v792
  %v795 = vmul.f32 %v779, %v793
  %v796 = vpack.c.bf16 %v795, %v794
  %v797 = vld [vmem:[%s8] sm:$0xf]
  %v798 = vld [vmem:[%s8 + $0x4] sm:$0xf]
  %v799 = vld [vmem:[%s8 + $0x8] sm:$0xf]
  %v800 = vld [vmem:[%s8 + $0xc] sm:$0xf]
  %v801 = vld [vmem:[%s8 + $0x10] sm:$0xf]
  %v802 = vld [vmem:[%s8 + $0x14] sm:$0xf]
  %v803 = vld [vmem:[%s8 + $0x18] sm:$0xf]
  %v804 = vld [vmem:[%s8 + $0x1c] sm:$0xf]
  %v805 = vld [vmem:[%s9] sm:$0x1]
  %v807 = vlaneseq
  %v808 = vshrl.u32 %v807, 7
  %v809 = vsub.s32 0, %v808
  %v810 = vrot.slane %v805, %v809
  %v820 = vunpack.c.l.b16 %v797
  %v821 = vunpack.c.l.b16 %v798
  %v822 = vunpack.c.l.b16 %v799
  %v823 = vunpack.c.l.b16 %v800
  %v824 = vunpack.c.l.b16 %v801
  %v825 = vunpack.c.l.b16 %v802
  %v826 = vunpack.c.l.b16 %v803
  %v827 = vunpack.c.l.b16 %v804
  %v828 = vpack.c.b16 %v821, %v820
  %v829 = vpack.c.b16 %v823, %v822
  %v830 = vpack.c.b16 %v825, %v824
  %v831 = vpack.c.b16 %v827, %v826
  %vm836 = vcmask 523264
  %v838 = vsel %vm836, %v796, 0
  %840 = vmatprep.subr.bf16.mxu0 0
  %841 = vmatpush1.bf16.msra.mxu0 %v828
  %842 = vmatprep.subr.bf16.mxu0 0
  %843 = vmatpush1.bf16.msra.mxu0 %v829
  %844 = vmatprep.subr.bf16.mxu0 0
  %845 = vmatpush1.bf16.msra.mxu0 %v830
  %846 = vmatprep.subr.bf16.mxu0 0
  %847 = vmatpush1.bf16.msra.mxu0 %v831
  %848 = vmatprep.subr.bf16.mxu0 0
  %849 = vmatpush1.bf16.msra.mxu0 0
  %850 = vmatprep.subr.bf16.mxu0 0
  %851 = vmatpush1.bf16.msra.mxu0 0
  %852 = vmatprep.subr.bf16.mxu0 0
  %853 = vmatpush1.bf16.msra.mxu0 0
  %854 = vmatprep.subr.bf16.mxu0 0
  %855 = vmatpush1.bf16.msra.mxu0 0
  %856 = vmatprep.subr.bf16.mxu0 0
  %857 = vmatpush1.bf16.msra.mxu0 0
  %858 = vmatprep.subr.bf16.mxu0 0
  %859 = vmatpush1.bf16.msra.mxu0 0
  %860 = vmatprep.subr.bf16.mxu0 0
  %861 = vmatpush1.bf16.msra.mxu0 0
  %862 = vmatprep.subr.bf16.mxu0 0
  %863 = vmatpush1.bf16.msra.mxu0 0
  %864 = vmatprep.subr.bf16.mxu0 0
  %865 = vmatpush1.bf16.msra.mxu0 0
  %866 = vmatprep.subr.bf16.mxu0 0
  %867 = vmatpush1.bf16.msra.mxu0 0
  %868 = vmatprep.subr.bf16.mxu0 0
  %869 = vmatpush1.bf16.msra.mxu0 0
  %870 = vmatprep.subr.bf16.mxu0 0
  %871 = vmatpush1.bf16.msra.mxu0 0
  %872 = vmatprep.mubr.bf16.mxu0 0
  %873 = vmatmul.mubr.bf16.gmra.mrb[0].mxu0 %v838
  %v874 = vpop.f32.mrb[0].mxu0
  %v875 = vadd.f32 %v810, %v874
  %v876 = vpop.f32.mrb[0].mxu0
  %v877 = vpop.f32.mrb[0].mxu0
  %v878 = vadd.f32 %v810, %v877
  %v879 = vpop.f32.mrb[0].mxu0
  %880 = vdwg.mxu0
  %v881 = vadd.f32 %v875, 0.0
  %v882 = vadd.f32 %v878, 0.0
  %v883 = vadd.f32 %v881, %v659
  %v884 = vadd.f32 %v882, %v662
  %s885 = scalar_lea.vmem %s2, 64
  %v886 = vld [vmem:[%s885] sm:$0xf]
  %v887 = vld [vmem:[%s885 + $0x4] sm:$0xf]
  %v888 = vld [vmem:[%s885 + $0x8] sm:$0xf]
  %v889 = vld [vmem:[%s885 + $0xc] sm:$0xf]
  %v890 = vld [vmem:[%s885 + $0x10] sm:$0xf]
  %v891 = vld [vmem:[%s885 + $0x14] sm:$0xf]
  %v892 = vld [vmem:[%s885 + $0x18] sm:$0xf]
  %v893 = vld [vmem:[%s885 + $0x1c] sm:$0xf]
  %v894 = vld [vmem:[%s885 + $0x20] sm:$0xf]
  %v895 = vld [vmem:[%s885 + $0x24] sm:$0xf]
  %v896 = vld [vmem:[%s885 + $0x28] sm:$0xf]
  %v897 = vld [vmem:[%s885 + $0x2c] sm:$0xf]
  %v898 = vld [vmem:[%s885 + $0x30] sm:$0xf]
  %v899 = vld [vmem:[%s885 + $0x34] sm:$0xf]
  %v900 = vld [vmem:[%s885 + $0x38] sm:$0xf]
  %v901 = vld [vmem:[%s885 + $0x3c] sm:$0xf]
  %v918 = vunpack.c.l.b16 %v886
  %v919 = vunpack.c.l.b16 %v887
  %v920 = vunpack.c.l.b16 %v888
  %v921 = vunpack.c.l.b16 %v889
  %v922 = vunpack.c.l.b16 %v890
  %v923 = vunpack.c.l.b16 %v891
  %v924 = vunpack.c.l.b16 %v892
  %v925 = vunpack.c.l.b16 %v893
  %v926 = vunpack.c.l.b16 %v894
  %v927 = vunpack.c.l.b16 %v895
  %v928 = vunpack.c.l.b16 %v896
  %v929 = vunpack.c.l.b16 %v897
  %v930 = vunpack.c.l.b16 %v898
  %v931 = vunpack.c.l.b16 %v899
  %v932 = vunpack.c.l.b16 %v900
  %v933 = vunpack.c.l.b16 %v901
  %v934 = vpack.c.b16 %v919, %v918
  %v935 = vpack.c.b16 %v921, %v920
  %v936 = vpack.c.b16 %v923, %v922
  %v937 = vpack.c.b16 %v925, %v924
  %v938 = vpack.c.b16 %v927, %v926
  %v939 = vpack.c.b16 %v929, %v928
  %v940 = vpack.c.b16 %v931, %v930
  %v941 = vpack.c.b16 %v933, %v932
  %950 = vmatprep.subr.bf16.mxu0 0
  %951 = vmatpush1.bf16.msra.mxu0 %v934
  %952 = vmatprep.subr.bf16.mxu0 0
  %953 = vmatpush1.bf16.msra.mxu0 %v935
  %954 = vmatprep.subr.bf16.mxu0 0
  %955 = vmatpush1.bf16.msra.mxu0 %v936
  %956 = vmatprep.subr.bf16.mxu0 0
  %957 = vmatpush1.bf16.msra.mxu0 %v937
  %958 = vmatprep.subr.bf16.mxu0 0
  %959 = vmatpush1.bf16.msra.mxu0 %v938
  %960 = vmatprep.subr.bf16.mxu0 0
  %961 = vmatpush1.bf16.msra.mxu0 %v939
  %962 = vmatprep.subr.bf16.mxu0 0
  %963 = vmatpush1.bf16.msra.mxu0 %v940
  %964 = vmatprep.subr.bf16.mxu0 0
  %965 = vmatpush1.bf16.msra.mxu0 %v941
  %966 = vmatprep.subr.bf16.mxu0 0
  %967 = vmatpush1.bf16.msra.mxu0 0
  %968 = vmatprep.subr.bf16.mxu0 0
  %969 = vmatpush1.bf16.msra.mxu0 0
  %970 = vmatprep.subr.bf16.mxu0 0
  %971 = vmatpush1.bf16.msra.mxu0 0
  %972 = vmatprep.subr.bf16.mxu0 0
  %973 = vmatpush1.bf16.msra.mxu0 0
  %974 = vmatprep.subr.bf16.mxu0 0
  %975 = vmatpush1.bf16.msra.mxu0 0
  %976 = vmatprep.subr.bf16.mxu0 0
  %977 = vmatpush1.bf16.msra.mxu0 0
  %978 = vmatprep.subr.bf16.mxu0 0
  %979 = vmatpush1.bf16.msra.mxu0 0
  %980 = vmatprep.subr.bf16.mxu0 0
  %981 = vmatpush1.bf16.msra.mxu0 0
  %982 = vmatprep.mubr.bf16.mxu0 0
  %983 = vmatmul.mubr.bf16.gmra.mrb[0].mxu0 0
  %v984 = vpop.f32.mrb[0].mxu0
  %v985 = vadd.f32 0.0, %v984
  %v986 = vpop.f32.mrb[0].mxu0
  %v987 = vpop.f32.mrb[0].mxu0
  %v988 = vpop.f32.mrb[0].mxu0
  %989 = vdwg.mxu0
  %v990 = vadd.f32 %v104, %v985
  %v991 = vtanh.pop %v990
  %v992 = vpack.c.bf16 %v991, %v991
  %993 = vmatprep.subr.bf16.mxu0 0
  %994 = vmatpush1.bf16.msra.mxu0 %v934
  %995 = vmatprep.subr.bf16.mxu0 0
  %996 = vmatpush1.bf16.msra.mxu0 %v935
  %997 = vmatprep.subr.bf16.mxu0 0
  %998 = vmatpush1.bf16.msra.mxu0 %v936
  %999 = vmatprep.subr.bf16.mxu0 0
  %1000 = vmatpush1.bf16.msra.mxu0 %v937
  %1001 = vmatprep.subr.bf16.mxu0 0
  %1002 = vmatpush1.bf16.msra.mxu0 %v938
  %1003 = vmatprep.subr.bf16.mxu0 0
  %1004 = vmatpush1.bf16.msra.mxu0 %v939
  %1005 = vmatprep.subr.bf16.mxu0 0
  %1006 = vmatpush1.bf16.msra.mxu0 %v940
  %1007 = vmatprep.subr.bf16.mxu0 0
  %1008 = vmatpush1.bf16.msra.mxu0 %v941
  %1009 = vmatprep.subr.bf16.mxu0 0
  %1010 = vmatpush1.bf16.msra.mxu0 0
  %1011 = vmatprep.subr.bf16.mxu0 0
  %1012 = vmatpush1.bf16.msra.mxu0 0
  %1013 = vmatprep.subr.bf16.mxu0 0
  %1014 = vmatpush1.bf16.msra.mxu0 0
  %1015 = vmatprep.subr.bf16.mxu0 0
  %1016 = vmatpush1.bf16.msra.mxu0 0
  %1017 = vmatprep.subr.bf16.mxu0 0
  %1018 = vmatpush1.bf16.msra.mxu0 0
  %1019 = vmatprep.subr.bf16.mxu0 0
  %1020 = vmatpush1.bf16.msra.mxu0 0
  %1021 = vmatprep.subr.bf16.mxu0 0
  %1022 = vmatpush1.bf16.msra.mxu0 0
  %1023 = vmatprep.subr.bf16.mxu0 0
  %1024 = vmatpush1.bf16.msra.mxu0 0
  %1025 = vmatprep.mubr.bf16.mxu0 0
  %1026 = vmatmul.mubr.bf16.gmra.mrb[0].mxu0 %v992
  %v1027 = vpop.f32.mrb[0].mxu0
  %v1028 = vadd.f32 0.0, %v1027
  %v1029 = vpop.f32.mrb[0].mxu0
  %v1030 = vpop.f32.mrb[0].mxu0
  %v1031 = vpop.f32.mrb[0].mxu0
  %1032 = vdwg.mxu0
  %v1034 = vrot.slane %v1028, 6
  %v1036 = vadd.f32 %v104, %v1034
  %v1037 = vtanh.pop %v1036
  %v1038 = vpack.c.bf16 %v1037, %v1037
  %v1040 = vrot.slane %v1038, 1
  %1042 = vmatprep.subr.bf16.mxu0 0
  %1043 = vmatpush1.bf16.msra.mxu0 %v934
  %1044 = vmatprep.subr.bf16.mxu0 0
  %1045 = vmatpush1.bf16.msra.mxu0 %v935
  %1046 = vmatprep.subr.bf16.mxu0 0
  %1047 = vmatpush1.bf16.msra.mxu0 %v936
  %1048 = vmatprep.subr.bf16.mxu0 0
  %1049 = vmatpush1.bf16.msra.mxu0 %v937
  %1050 = vmatprep.subr.bf16.mxu0 0
  %1051 = vmatpush1.bf16.msra.mxu0 %v938
  %1052 = vmatprep.subr.bf16.mxu0 0
  %1053 = vmatpush1.bf16.msra.mxu0 %v939
  %1054 = vmatprep.subr.bf16.mxu0 0
  %1055 = vmatpush1.bf16.msra.mxu0 %v940
  %1056 = vmatprep.subr.bf16.mxu0 0
  %1057 = vmatpush1.bf16.msra.mxu0 %v941
  %1058 = vmatprep.subr.bf16.mxu0 0
  %1059 = vmatpush1.bf16.msra.mxu0 0
  %1060 = vmatprep.subr.bf16.mxu0 0
  %1061 = vmatpush1.bf16.msra.mxu0 0
  %1062 = vmatprep.subr.bf16.mxu0 0
  %1063 = vmatpush1.bf16.msra.mxu0 0
  %1064 = vmatprep.subr.bf16.mxu0 0
  %1065 = vmatpush1.bf16.msra.mxu0 0
  %1066 = vmatprep.subr.bf16.mxu0 0
  %1067 = vmatpush1.bf16.msra.mxu0 0
  %1068 = vmatprep.subr.bf16.mxu0 0
  %1069 = vmatpush1.bf16.msra.mxu0 0
  %1070 = vmatprep.subr.bf16.mxu0 0
  %1071 = vmatpush1.bf16.msra.mxu0 0
  %1072 = vmatprep.subr.bf16.mxu0 0
  %1073 = vmatpush1.bf16.msra.mxu0 0
  %1074 = vmatprep.mubr.bf16.mxu0 0
  %1075 = vmatmul.mubr.bf16.gmra.mrb[0].mxu0 %v1040
  %v1076 = vpop.f32.mrb[0].mxu0
  %v1077 = vadd.f32 0.0, %v1076
  %v1078 = vpop.f32.mrb[0].mxu0
  %v1079 = vpop.f32.mrb[0].mxu0
  %v1080 = vpop.f32.mrb[0].mxu0
  %1081 = vdwg.mxu0
  %v1083 = vrot.slane %v1077, 4
  %v1085 = vadd.f32 %v104, %v1083
  %v1086 = vtanh.pop %v1085
  %v1087 = vpack.c.bf16 %v1086, %v1086
  %v1089 = vrot.slane %v1087, 2
  %1091 = vmatprep.subr.bf16.mxu0 0
  %1092 = vmatpush1.bf16.msra.mxu0 %v934
  %1093 = vmatprep.subr.bf16.mxu0 0
  %1094 = vmatpush1.bf16.msra.mxu0 %v935
  %1095 = vmatprep.subr.bf16.mxu0 0
  %1096 = vmatpush1.bf16.msra.mxu0 %v936
  %1097 = vmatprep.subr.bf16.mxu0 0
  %1098 = vmatpush1.bf16.msra.mxu0 %v937
  %1099 = vmatprep.subr.bf16.mxu0 0
  %1100 = vmatpush1.bf16.msra.mxu0 %v938
  %1101 = vmatprep.subr.bf16.mxu0 0
  %1102 = vmatpush1.bf16.msra.mxu0 %v939
  %1103 = vmatprep.subr.bf16.mxu0 0
  %1104 = vmatpush1.bf16.msra.mxu0 %v940
  %1105 = vmatprep.subr.bf16.mxu0 0
  %1106 = vmatpush1.bf16.msra.mxu0 %v941
  %1107 = vmatprep.subr.bf16.mxu0 0
  %1108 = vmatpush1.bf16.msra.mxu0 0
  %1109 = vmatprep.subr.bf16.mxu0 0
  %1110 = vmatpush1.bf16.msra.mxu0 0
  %1111 = vmatprep.subr.bf16.mxu0 0
  %1112 = vmatpush1.bf16.msra.mxu0 0
  %1113 = vmatprep.subr.bf16.mxu0 0
  %1114 = vmatpush1.bf16.msra.mxu0 0
  %1115 = vmatprep.subr.bf16.mxu0 0
  %1116 = vmatpush1.bf16.msra.mxu0 0
  %1117 = vmatprep.subr.bf16.mxu0 0
  %1118 = vmatpush1.bf16.msra.mxu0 0
  %1119 = vmatprep.subr.bf16.mxu0 0
  %1120 = vmatpush1.bf16.msra.mxu0 0
  %1121 = vmatprep.subr.bf16.mxu0 0
  %1122 = vmatpush1.bf16.msra.mxu0 0
  %1123 = vmatprep.mubr.bf16.mxu0 0
  %1124 = vmatmul.mubr.bf16.gmra.mrb[0].mxu0 %v1089
  %v1125 = vpop.f32.mrb[0].mxu0
  %v1126 = vadd.f32 0.0, %v1125
  %v1127 = vpop.f32.mrb[0].mxu0
  %v1128 = vpop.f32.mrb[0].mxu0
  %v1129 = vpop.f32.mrb[0].mxu0
  %1130 = vdwg.mxu0
  %v1132 = vrot.slane %v1126, 2
  %v1134 = vadd.f32 %v104, %v1132
  %v1135 = vtanh.pop %v1134
  %v1136 = vpack.c.bf16 %v1135, %v1135
  %v1138 = vrot.slane %v1136, 3
  %1140 = vmatprep.subr.bf16.mxu0 0
  %1141 = vmatpush1.bf16.msra.mxu0 %v934
  %1142 = vmatprep.subr.bf16.mxu0 0
  %1143 = vmatpush1.bf16.msra.mxu0 %v935
  %1144 = vmatprep.subr.bf16.mxu0 0
  %1145 = vmatpush1.bf16.msra.mxu0 %v936
  %1146 = vmatprep.subr.bf16.mxu0 0
  %1147 = vmatpush1.bf16.msra.mxu0 %v937
  %1148 = vmatprep.subr.bf16.mxu0 0
  %1149 = vmatpush1.bf16.msra.mxu0 %v938
  %1150 = vmatprep.subr.bf16.mxu0 0
  %1151 = vmatpush1.bf16.msra.mxu0 %v939
  %1152 = vmatprep.subr.bf16.mxu0 0
  %1153 = vmatpush1.bf16.msra.mxu0 %v940
  %1154 = vmatprep.subr.bf16.mxu0 0
  %1155 = vmatpush1.bf16.msra.mxu0 %v941
  %1156 = vmatprep.subr.bf16.mxu0 0
  %1157 = vmatpush1.bf16.msra.mxu0 0
  %1158 = vmatprep.subr.bf16.mxu0 0
  %1159 = vmatpush1.bf16.msra.mxu0 0
  %1160 = vmatprep.subr.bf16.mxu0 0
  %1161 = vmatpush1.bf16.msra.mxu0 0
  %1162 = vmatprep.subr.bf16.mxu0 0
  %1163 = vmatpush1.bf16.msra.mxu0 0
  %1164 = vmatprep.subr.bf16.mxu0 0
  %1165 = vmatpush1.bf16.msra.mxu0 0
  %1166 = vmatprep.subr.bf16.mxu0 0
  %1167 = vmatpush1.bf16.msra.mxu0 0
  %1168 = vmatprep.subr.bf16.mxu0 0
  %1169 = vmatpush1.bf16.msra.mxu0 0
  %1170 = vmatprep.subr.bf16.mxu0 0
  %1171 = vmatpush1.bf16.msra.mxu0 0
  %1172 = vmatprep.mubr.bf16.mxu0 0
  %1173 = vmatmul.mubr.bf16.gmra.mrb[0].mxu0 %v1138
  %v1174 = vpop.f32.mrb[0].mxu0
  %v1175 = vadd.f32 0.0, %v1174
  %v1176 = vpop.f32.mrb[0].mxu0
  %v1177 = vpop.f32.mrb[0].mxu0
  %v1178 = vpop.f32.mrb[0].mxu0
  %1179 = vdwg.mxu0
  %v1180 = vadd.f32 %v108, %v1175
  %v1181 = vtanh.pop %v1180
  %v1182 = vpack.c.bf16 %v1181, %v1181
  %1183 = vmatprep.subr.bf16.mxu0 0
  %1184 = vmatpush1.bf16.msra.mxu0 %v934
  %1185 = vmatprep.subr.bf16.mxu0 0
  %1186 = vmatpush1.bf16.msra.mxu0 %v935
  %1187 = vmatprep.subr.bf16.mxu0 0
  %1188 = vmatpush1.bf16.msra.mxu0 %v936
  %1189 = vmatprep.subr.bf16.mxu0 0
  %1190 = vmatpush1.bf16.msra.mxu0 %v937
  %1191 = vmatprep.subr.bf16.mxu0 0
  %1192 = vmatpush1.bf16.msra.mxu0 %v938
  %1193 = vmatprep.subr.bf16.mxu0 0
  %1194 = vmatpush1.bf16.msra.mxu0 %v939
  %1195 = vmatprep.subr.bf16.mxu0 0
  %1196 = vmatpush1.bf16.msra.mxu0 %v940
  %1197 = vmatprep.subr.bf16.mxu0 0
  %1198 = vmatpush1.bf16.msra.mxu0 %v941
  %1199 = vmatprep.subr.bf16.mxu0 0
  %1200 = vmatpush1.bf16.msra.mxu0 0
  %1201 = vmatprep.subr.bf16.mxu0 0
  %1202 = vmatpush1.bf16.msra.mxu0 0
  %1203 = vmatprep.subr.bf16.mxu0 0
  %1204 = vmatpush1.bf16.msra.mxu0 0
  %1205 = vmatprep.subr.bf16.mxu0 0
  %1206 = vmatpush1.bf16.msra.mxu0 0
  %1207 = vmatprep.subr.bf16.mxu0 0
  %1208 = vmatpush1.bf16.msra.mxu0 0
  %1209 = vmatprep.subr.bf16.mxu0 0
  %1210 = vmatpush1.bf16.msra.mxu0 0
  %1211 = vmatprep.subr.bf16.mxu0 0
  %1212 = vmatpush1.bf16.msra.mxu0 0
  %1213 = vmatprep.subr.bf16.mxu0 0
  %1214 = vmatpush1.bf16.msra.mxu0 0
  %1215 = vmatprep.mubr.bf16.mxu0 0
  %1216 = vmatmul.mubr.bf16.gmra.mrb[0].mxu0 %v1182
  %v1217 = vpop.f32.mrb[0].mxu0
  %v1218 = vadd.f32 0.0, %v1217
  %v1219 = vpop.f32.mrb[0].mxu0
  %v1220 = vpop.f32.mrb[0].mxu0
  %v1221 = vpop.f32.mrb[0].mxu0
  %1222 = vdwg.mxu0
  %v1224 = vrot.slane %v1218, 6
  %v1226 = vadd.f32 %v108, %v1224
  %v1227 = vtanh.pop %v1226
  %v1228 = vpack.c.bf16 %v1227, %v1227
  %v1230 = vrot.slane %v1228, 1
  %1232 = vmatprep.subr.bf16.mxu0 0
  %1233 = vmatpush1.bf16.msra.mxu0 %v934
  %1234 = vmatprep.subr.bf16.mxu0 0
  %1235 = vmatpush1.bf16.msra.mxu0 %v935
  %1236 = vmatprep.subr.bf16.mxu0 0
  %1237 = vmatpush1.bf16.msra.mxu0 %v936
  %1238 = vmatprep.subr.bf16.mxu0 0
  %1239 = vmatpush1.bf16.msra.mxu0 %v937
  %1240 = vmatprep.subr.bf16.mxu0 0
  %1241 = vmatpush1.bf16.msra.mxu0 %v938
  %1242 = vmatprep.subr.bf16.mxu0 0
  %1243 = vmatpush1.bf16.msra.mxu0 %v939
  %1244 = vmatprep.subr.bf16.mxu0 0
  %1245 = vmatpush1.bf16.msra.mxu0 %v940
  %1246 = vmatprep.subr.bf16.mxu0 0
  %1247 = vmatpush1.bf16.msra.mxu0 %v941
  %1248 = vmatprep.subr.bf16.mxu0 0
  %1249 = vmatpush1.bf16.msra.mxu0 0
  %1250 = vmatprep.subr.bf16.mxu0 0
  %1251 = vmatpush1.bf16.msra.mxu0 0
  %1252 = vmatprep.subr.bf16.mxu0 0
  %1253 = vmatpush1.bf16.msra.mxu0 0
  %1254 = vmatprep.subr.bf16.mxu0 0
  %1255 = vmatpush1.bf16.msra.mxu0 0
  %1256 = vmatprep.subr.bf16.mxu0 0
  %1257 = vmatpush1.bf16.msra.mxu0 0
  %1258 = vmatprep.subr.bf16.mxu0 0
  %1259 = vmatpush1.bf16.msra.mxu0 0
  %1260 = vmatprep.subr.bf16.mxu0 0
  %1261 = vmatpush1.bf16.msra.mxu0 0
  %1262 = vmatprep.subr.bf16.mxu0 0
  %1263 = vmatpush1.bf16.msra.mxu0 0
  %1264 = vmatprep.mubr.bf16.mxu0 0
  %1265 = vmatmul.mubr.bf16.gmra.mrb[0].mxu0 %v1230
  %v1266 = vpop.f32.mrb[0].mxu0
  %v1267 = vadd.f32 0.0, %v1266
  %v1268 = vpop.f32.mrb[0].mxu0
  %v1269 = vpop.f32.mrb[0].mxu0
  %v1270 = vpop.f32.mrb[0].mxu0
  %1271 = vdwg.mxu0
  %v1273 = vrot.slane %v1267, 4
  %v1275 = vadd.f32 %v108, %v1273
  %v1276 = vtanh.pop %v1275
  %v1277 = vpack.c.bf16 %v1276, %v1276
  %v1279 = vrot.slane %v1277, 2
  %1281 = vmatprep.subr.bf16.mxu0 0
  %1282 = vmatpush1.bf16.msra.mxu0 %v934
  %1283 = vmatprep.subr.bf16.mxu0 0
  %1284 = vmatpush1.bf16.msra.mxu0 %v935
  %1285 = vmatprep.subr.bf16.mxu0 0
  %1286 = vmatpush1.bf16.msra.mxu0 %v936
  %1287 = vmatprep.subr.bf16.mxu0 0
  %1288 = vmatpush1.bf16.msra.mxu0 %v937
  %1289 = vmatprep.subr.bf16.mxu0 0
  %1290 = vmatpush1.bf16.msra.mxu0 %v938
  %1291 = vmatprep.subr.bf16.mxu0 0
  %1292 = vmatpush1.bf16.msra.mxu0 %v939
  %1293 = vmatprep.subr.bf16.mxu0 0
  %1294 = vmatpush1.bf16.msra.mxu0 %v940
  %1295 = vmatprep.subr.bf16.mxu0 0
  %1296 = vmatpush1.bf16.msra.mxu0 %v941
  %1297 = vmatprep.subr.bf16.mxu0 0
  %1298 = vmatpush1.bf16.msra.mxu0 0
  %1299 = vmatprep.subr.bf16.mxu0 0
  %1300 = vmatpush1.bf16.msra.mxu0 0
  %1301 = vmatprep.subr.bf16.mxu0 0
  %1302 = vmatpush1.bf16.msra.mxu0 0
  %1303 = vmatprep.subr.bf16.mxu0 0
  %1304 = vmatpush1.bf16.msra.mxu0 0
  %1305 = vmatprep.subr.bf16.mxu0 0
  %1306 = vmatpush1.bf16.msra.mxu0 0
  %1307 = vmatprep.subr.bf16.mxu0 0
  %1308 = vmatpush1.bf16.msra.mxu0 0
  %1309 = vmatprep.subr.bf16.mxu0 0
  %1310 = vmatpush1.bf16.msra.mxu0 0
  %1311 = vmatprep.subr.bf16.mxu0 0
  %1312 = vmatpush1.bf16.msra.mxu0 0
  %1313 = vmatprep.mubr.bf16.mxu0 0
  %1314 = vmatmul.mubr.bf16.gmra.mrb[0].mxu0 %v1279
  %v1315 = vpop.f32.mrb[0].mxu0
  %v1316 = vadd.f32 0.0, %v1315
  %v1317 = vpop.f32.mrb[0].mxu0
  %v1318 = vpop.f32.mrb[0].mxu0
  %v1319 = vpop.f32.mrb[0].mxu0
  %1320 = vdwg.mxu0
  %v1322 = vrot.slane %v1316, 2
  %v1324 = vadd.f32 %v108, %v1322
  %v1325 = vtanh.pop %v1324
  %v1326 = vsel %vm550, %v991, %v1037
  %v1327 = vsel %vm552, %v1326, %v1086
  %v1328 = vsel %vm554, %v1327, %v1135
  %v1329 = vsel %vm550, %v1181, %v1227
  %v1330 = vsel %vm552, %v1329, %v1276
  %v1331 = vsel %vm554, %v1330, %v1325
  %v1332 = vpack.c.bf16 %v1331, %v1328
  %s1333 = scalar_lea.vmem %s3, 64
  %v1334 = vld [vmem:[%s1333] sm:$0xf]
  %v1335 = vld [vmem:[%s1333 + $0x4] sm:$0xf]
  %v1336 = vld [vmem:[%s1333 + $0x8] sm:$0xf]
  %v1337 = vld [vmem:[%s1333 + $0xc] sm:$0xf]
  %v1338 = vld [vmem:[%s1333 + $0x10] sm:$0xf]
  %v1339 = vld [vmem:[%s1333 + $0x14] sm:$0xf]
  %v1340 = vld [vmem:[%s1333 + $0x18] sm:$0xf]
  %v1341 = vld [vmem:[%s1333 + $0x1c] sm:$0xf]
  %v1342 = vld [vmem:[%s1333 + $0x20] sm:$0xf]
  %v1343 = vld [vmem:[%s1333 + $0x24] sm:$0xf]
  %v1344 = vld [vmem:[%s1333 + $0x28] sm:$0xf]
  %v1345 = vld [vmem:[%s1333 + $0x2c] sm:$0xf]
  %v1346 = vld [vmem:[%s1333 + $0x30] sm:$0xf]
  %v1347 = vld [vmem:[%s1333 + $0x34] sm:$0xf]
  %v1348 = vld [vmem:[%s1333 + $0x38] sm:$0xf]
  %v1349 = vld [vmem:[%s1333 + $0x3c] sm:$0xf]
  %v1366 = vunpack.c.l.b16 %v1334
  %v1367 = vunpack.c.l.b16 %v1335
  %v1368 = vunpack.c.l.b16 %v1336
  %v1369 = vunpack.c.l.b16 %v1337
  %v1370 = vunpack.c.l.b16 %v1338
  %v1371 = vunpack.c.l.b16 %v1339
  %v1372 = vunpack.c.l.b16 %v1340
  %v1373 = vunpack.c.l.b16 %v1341
  %v1374 = vunpack.c.l.b16 %v1342
  %v1375 = vunpack.c.l.b16 %v1343
  %v1376 = vunpack.c.l.b16 %v1344
  %v1377 = vunpack.c.l.b16 %v1345
  %v1378 = vunpack.c.l.b16 %v1346
  %v1379 = vunpack.c.l.b16 %v1347
  %v1380 = vunpack.c.l.b16 %v1348
  %v1381 = vunpack.c.l.b16 %v1349
  %v1382 = vpack.c.b16 %v1367, %v1366
  %v1383 = vpack.c.b16 %v1369, %v1368
  %v1384 = vpack.c.b16 %v1371, %v1370
  %v1385 = vpack.c.b16 %v1373, %v1372
  %v1386 = vpack.c.b16 %v1375, %v1374
  %v1387 = vpack.c.b16 %v1377, %v1376
  %v1388 = vpack.c.b16 %v1379, %v1378
  %v1389 = vpack.c.b16 %v1381, %v1380
  %1398 = vmatprep.subr.bf16.mxu0 0
  %1399 = vmatpush1.bf16.msra.mxu0 %v1382
  %1400 = vmatprep.subr.bf16.mxu0 0
  %1401 = vmatpush1.bf16.msra.mxu0 %v1383
  %1402 = vmatprep.subr.bf16.mxu0 0
  %1403 = vmatpush1.bf16.msra.mxu0 %v1384
  %1404 = vmatprep.subr.bf16.mxu0 0
  %1405 = vmatpush1.bf16.msra.mxu0 %v1385
  %1406 = vmatprep.subr.bf16.mxu0 0
  %1407 = vmatpush1.bf16.msra.mxu0 %v1386
  %1408 = vmatprep.subr.bf16.mxu0 0
  %1409 = vmatpush1.bf16.msra.mxu0 %v1387
  %1410 = vmatprep.subr.bf16.mxu0 0
  %1411 = vmatpush1.bf16.msra.mxu0 %v1388
  %1412 = vmatprep.subr.bf16.mxu0 0
  %1413 = vmatpush1.bf16.msra.mxu0 %v1389
  %1414 = vmatprep.subr.bf16.mxu0 0
  %1415 = vmatpush1.bf16.msra.mxu0 0
  %1416 = vmatprep.subr.bf16.mxu0 0
  %1417 = vmatpush1.bf16.msra.mxu0 0
  %1418 = vmatprep.subr.bf16.mxu0 0
  %1419 = vmatpush1.bf16.msra.mxu0 0
  %1420 = vmatprep.subr.bf16.mxu0 0
  %1421 = vmatpush1.bf16.msra.mxu0 0
  %1422 = vmatprep.subr.bf16.mxu0 0
  %1423 = vmatpush1.bf16.msra.mxu0 0
  %1424 = vmatprep.subr.bf16.mxu0 0
  %1425 = vmatpush1.bf16.msra.mxu0 0
  %1426 = vmatprep.subr.bf16.mxu0 0
  %1427 = vmatpush1.bf16.msra.mxu0 0
  %1428 = vmatprep.subr.bf16.mxu0 0
  %1429 = vmatpush1.bf16.msra.mxu0 0
  %1430 = vmatprep.mubr.bf16.mxu0 0
  %1431 = vmatmul.mubr.bf16.gmra.mrb[0].mxu0 %v1332
  %v1432 = vpop.f32.mrb[0].mxu0
  %v1433 = vadd.f32 0.0, %v1432
  %v1434 = vpop.f32.mrb[0].mxu0
  %v1435 = vpop.f32.mrb[0].mxu0
  %v1436 = vadd.f32 0.0, %v1435
  %v1437 = vpop.f32.mrb[0].mxu0
  %1438 = vdwg.mxu0
  %v1439 = vsel %vm63, %v1433, 0.0
  %1440 = vadd.xlane.f32.xlu0 %v1439
  %v1441 = vpop.xlane.xlu0 %1440
  %v1442 = vsel %vm63, %v1436, 0.0
  %1443 = vadd.xlane.f32.xlu0 %v1442
  %v1444 = vpop.xlane.xlu0 %1443
  %v1445 = vmul.f32 %v1441, %v671
  %v1446 = vmul.f32 %v1444, %v671
  %v1447 = vsub.f32 %v1433, %v1445
  %v1448 = vsub.f32 %v1436, %v1446
  %v1449 = vmul.f32 %v1447, %v1447
  %v1450 = vmul.f32 %v1448, %v1448
  %v1451 = vsel %vm63, %v1449, 0.0
  %1452 = vadd.xlane.f32.xlu0 %v1451
  %v1453 = vpop.xlane.xlu0 %1452
  %v1454 = vsel %vm63, %v1450, 0.0
  %1455 = vadd.xlane.f32.xlu0 %v1454
  %v1456 = vpop.xlane.xlu0 %1455
  %v1457 = vmul.f32 %v1453, %v671
  %v1458 = vmul.f32 %v1456, %v671
  %v1459 = vadd.f32 %v1457, 1e-05
  %v1460 = vadd.f32 %v1458, 1e-05
  %v1461 = vrsqrt.pop %v1459
  %v1462 = vrsqrt.pop %v1460
  %v1463 = vmul.f32 %v1447, %v1461
  %v1464 = vmul.f32 %v1448, %v1462
  %s1465 = scalar_lea.vmem %s4, 1
  %v1466 = vld [vmem:[%s1465] sm:$0x1]
  %v1468 = vlaneseq
  %v1469 = vshrl.u32 %v1468, 7
  %v1470 = vsub.s32 0, %v1469
  %v1471 = vrot.slane %v1466, %v1470
  %v1473 = vmul.f32 %v1463, %v1471
  %v1474 = vmul.f32 %v1464, %v1471
  %s1475 = scalar_lea.vmem %s5, 1
  %v1476 = vld [vmem:[%s1475] sm:$0x1]
  %v1478 = vlaneseq
  %v1479 = vshrl.u32 %v1478, 7
  %v1480 = vsub.s32 0, %v1479
  %v1481 = vrot.slane %v1476, %v1480
  %v1483 = vadd.f32 %v1473, %v1481
  %v1484 = vadd.f32 %v1474, %v1481
  %v1485 = vpack.c.bf16 %v1484, %v1483
  %s1486 = scalar_lea.vmem %s6, 16
  %v1487 = vld [vmem:[%s1486] sm:$0xf]
  %v1488 = vld [vmem:[%s1486 + $0x4] sm:$0xf]
  %v1489 = vld [vmem:[%s1486 + $0x8] sm:$0xf]
  %v1490 = vld [vmem:[%s1486 + $0xc] sm:$0xf]
  %s1491 = scalar_lea.vmem %s7, 1
  %v1492 = vld [vmem:[%s1491] sm:$0x1]
  %v1494 = vlaneseq
  %v1495 = vshrl.u32 %v1494, 7
  %v1496 = vsub.s32 0, %v1495
  %v1497 = vrot.slane %v1492, %v1496
  %v1503 = vunpack.c.l.b16 %v1487
  %v1504 = vunpack.c.l.b16 %v1488
  %v1505 = vunpack.c.l.b16 %v1489
  %v1506 = vunpack.c.l.b16 %v1490
  %v1507 = vpack.c.b16 %v1504, %v1503
  %v1508 = vpack.c.b16 %v1506, %v1505
  %v1512 = vsel %vm63, %v1485, 0
  %1514 = vmatprep.subr.bf16.mxu0 0
  %1515 = vmatpush1.bf16.msra.mxu0 %v1507
  %1516 = vmatprep.subr.bf16.mxu0 0
  %1517 = vmatpush1.bf16.msra.mxu0 %v1508
  %1518 = vmatprep.subr.bf16.mxu0 0
  %1519 = vmatpush1.bf16.msra.mxu0 0
  %1520 = vmatprep.subr.bf16.mxu0 0
  %1521 = vmatpush1.bf16.msra.mxu0 0
  %1522 = vmatprep.subr.bf16.mxu0 0
  %1523 = vmatpush1.bf16.msra.mxu0 0
  %1524 = vmatprep.subr.bf16.mxu0 0
  %1525 = vmatpush1.bf16.msra.mxu0 0
  %1526 = vmatprep.subr.bf16.mxu0 0
  %1527 = vmatpush1.bf16.msra.mxu0 0
  %1528 = vmatprep.subr.bf16.mxu0 0
  %1529 = vmatpush1.bf16.msra.mxu0 0
  %1530 = vmatprep.subr.bf16.mxu0 0
  %1531 = vmatpush1.bf16.msra.mxu0 0
  %1532 = vmatprep.subr.bf16.mxu0 0
  %1533 = vmatpush1.bf16.msra.mxu0 0
  %1534 = vmatprep.subr.bf16.mxu0 0
  %1535 = vmatpush1.bf16.msra.mxu0 0
  %1536 = vmatprep.subr.bf16.mxu0 0
  %1537 = vmatpush1.bf16.msra.mxu0 0
  %1538 = vmatprep.subr.bf16.mxu0 0
  %1539 = vmatpush1.bf16.msra.mxu0 0
  %1540 = vmatprep.subr.bf16.mxu0 0
  %1541 = vmatpush1.bf16.msra.mxu0 0
  %1542 = vmatprep.subr.bf16.mxu0 0
  %1543 = vmatpush1.bf16.msra.mxu0 0
  %1544 = vmatprep.subr.bf16.mxu0 0
  %1545 = vmatpush1.bf16.msra.mxu0 0
  %1546 = vmatprep.mubr.bf16.mxu0 0
  %1547 = vmatmul.mubr.bf16.gmra.mrb[0].mxu0 %v1512
  %v1548 = vpop.f32.mrb[0].mxu0
  %v1549 = vadd.f32 %v1497, %v1548
  %v1550 = vpop.f32.mrb[0].mxu0
  %v1551 = vpop.f32.mrb[0].mxu0
  %v1552 = vadd.f32 %v1497, %v1551
  %v1553 = vpop.f32.mrb[0].mxu0
  %1554 = vdwg.mxu0
  %v1555 = vmul.f32 %v1549, 0.5
  %v1556 = vmul.f32 %v1552, 0.5
  %v1557 = vmul.f32 %v1549, 0.044715
  %v1558 = vmul.f32 %v1552, 0.044715
  %v1559 = vmul.f32 %v1557, %v1549
  %v1560 = vmul.f32 %v1558, %v1552
  %v1561 = vmul.f32 %v1559, %v1549
  %v1562 = vmul.f32 %v1560, %v1552
  %v1563 = vadd.f32 %v1549, %v1561
  %v1564 = vadd.f32 %v1552, %v1562
  %v1565 = vmul.f32 %v1563, 0.7978846
  %v1566 = vmul.f32 %v1564, 0.7978846
  %v1567 = vtanh.pop %v1565
  %v1568 = vtanh.pop %v1566
  %v1569 = vadd.f32 %v1567, 1.0
  %v1570 = vadd.f32 %v1568, 1.0
  %v1571 = vmul.f32 %v1555, %v1569
  %v1572 = vmul.f32 %v1556, %v1570
  %v1573 = vpack.c.bf16 %v1572, %v1571
  %s1574 = scalar_lea.vmem %s8, 32
  %v1575 = vld [vmem:[%s1574] sm:$0xf]
  %v1576 = vld [vmem:[%s1574 + $0x4] sm:$0xf]
  %v1577 = vld [vmem:[%s1574 + $0x8] sm:$0xf]
  %v1578 = vld [vmem:[%s1574 + $0xc] sm:$0xf]
  %v1579 = vld [vmem:[%s1574 + $0x10] sm:$0xf]
  %v1580 = vld [vmem:[%s1574 + $0x14] sm:$0xf]
  %v1581 = vld [vmem:[%s1574 + $0x18] sm:$0xf]
  %v1582 = vld [vmem:[%s1574 + $0x1c] sm:$0xf]
  %s1583 = scalar_lea.vmem %s9, 1
  %v1584 = vld [vmem:[%s1583] sm:$0x1]
  %v1586 = vlaneseq
  %v1587 = vshrl.u32 %v1586, 7
  %v1588 = vsub.s32 0, %v1587
  %v1589 = vrot.slane %v1584, %v1588
  %v1599 = vunpack.c.l.b16 %v1575
  %v1600 = vunpack.c.l.b16 %v1576
  %v1601 = vunpack.c.l.b16 %v1577
  %v1602 = vunpack.c.l.b16 %v1578
  %v1603 = vunpack.c.l.b16 %v1579
  %v1604 = vunpack.c.l.b16 %v1580
  %v1605 = vunpack.c.l.b16 %v1581
  %v1606 = vunpack.c.l.b16 %v1582
  %v1607 = vpack.c.b16 %v1600, %v1599
  %v1608 = vpack.c.b16 %v1602, %v1601
  %v1609 = vpack.c.b16 %v1604, %v1603
  %v1610 = vpack.c.b16 %v1606, %v1605
  %v1616 = vsel %vm836, %v1573, 0
  %1618 = vmatprep.subr.bf16.mxu0 0
  %1619 = vmatpush1.bf16.msra.mxu0 %v1607
  %1620 = vmatprep.subr.bf16.mxu0 0
  %1621 = vmatpush1.bf16.msra.mxu0 %v1608
  %1622 = vmatprep.subr.bf16.mxu0 0
  %1623 = vmatpush1.bf16.msra.mxu0 %v1609
  %1624 = vmatprep.subr.bf16.mxu0 0
  %1625 = vmatpush1.bf16.msra.mxu0 %v1610
  %1626 = vmatprep.subr.bf16.mxu0 0
  %1627 = vmatpush1.bf16.msra.mxu0 0
  %1628 = vmatprep.subr.bf16.mxu0 0
  %1629 = vmatpush1.bf16.msra.mxu0 0
  %1630 = vmatprep.subr.bf16.mxu0 0
  %1631 = vmatpush1.bf16.msra.mxu0 0
  %1632 = vmatprep.subr.bf16.mxu0 0
  %1633 = vmatpush1.bf16.msra.mxu0 0
  %1634 = vmatprep.subr.bf16.mxu0 0
  %1635 = vmatpush1.bf16.msra.mxu0 0
  %1636 = vmatprep.subr.bf16.mxu0 0
  %1637 = vmatpush1.bf16.msra.mxu0 0
  %1638 = vmatprep.subr.bf16.mxu0 0
  %1639 = vmatpush1.bf16.msra.mxu0 0
  %1640 = vmatprep.subr.bf16.mxu0 0
  %1641 = vmatpush1.bf16.msra.mxu0 0
  %1642 = vmatprep.subr.bf16.mxu0 0
  %1643 = vmatpush1.bf16.msra.mxu0 0
  %1644 = vmatprep.subr.bf16.mxu0 0
  %1645 = vmatpush1.bf16.msra.mxu0 0
  %1646 = vmatprep.subr.bf16.mxu0 0
  %1647 = vmatpush1.bf16.msra.mxu0 0
  %1648 = vmatprep.subr.bf16.mxu0 0
  %1649 = vmatpush1.bf16.msra.mxu0 0
  %1650 = vmatprep.mubr.bf16.mxu0 0
  %1651 = vmatmul.mubr.bf16.gmra.mrb[0].mxu0 %v1616
  %v1652 = vpop.f32.mrb[0].mxu0
  %v1653 = vadd.f32 %v1589, %v1652
  %v1654 = vpop.f32.mrb[0].mxu0
  %v1655 = vpop.f32.mrb[0].mxu0
  %v1656 = vadd.f32 %v1589, %v1655
  %v1657 = vpop.f32.mrb[0].mxu0
  %1658 = vdwg.mxu0
  %v1659 = vadd.f32 %v883, %v1653
  %v1660 = vadd.f32 %v884, %v1656
  %v1661 = vadd.f32 %v1659, %v1433
  %v1662 = vadd.f32 %v1660, %v1436
  %v1663 = vmul.f32 %v1661, 0.5
  %v1664 = vmul.f32 %v1662, 0.5
  %1665 = vst.msk [vmem:[%s10] sm:$0xff] %vm63, %v1663
  %1666 = vst.msk [vmem:[%s10 + $0x8] sm:$0xff] %vm63, %v1664
  // Predicated region
  $region42: #{reservoir_forward.1} parent=0 // pred_check
    _
  $region43: #{reservoir_forward.1} parent=0 // pred_check_branch
    %1668 = sbr.rel (0) target = $region45
  $region44: #{reservoir_forward.1} parent=0 // pred_region
    _
  $region45: #{reservoir_forward.1} parent=0 // pred_fallthru
    _
  // Predicated region
  $region46: #{reservoir_forward.1} parent=0 // pred_check
    _
  $region47: #{reservoir_forward.1} parent=0 // pred_check_branch
    %1670 = sbr.rel (0) target = $region49
  $region48: #{reservoir_forward.1} parent=0 // pred_region
    _
  $region49: #{reservoir_forward.1} parent=0 // pred_fallthru
    _

</llo_original>
